<compile_context>
chip_gen: v7x
topology: tpu7x:2x2x1
jax: 0.10.0
libtpu: 0.0.40
codegen_flags: <defaults>
</compile_context>

<pallas_src>
import jax
import jax.numpy as jnp
from jax.experimental import pallas as pl

# ---- scaled-down config (structure identical to the PyTorch module) --------
CFGS = [32] * 5          # original: [64] * 5
NODES = 8                # original: nodes_num_list[i] = 1000
LAST_LAYER = NODES       # original: last_layer = 1000 (== number of nodes)
IN_FEAT = 16             # original: data.w
FC1_HIDDEN = 64          # original: 512
NUM_CLASSES = 20
BN_EPS = 1e-5
BATCH = 2
NUM_LAYERS = len(CFGS)


# ----------------------------- fused kernel ---------------------------------
def fused_gcn_kernel(*refs):
    # refs layout (inputs..., output):
    #   refs[0]  h_ref   : (B*N, F)      node-major folded batch (row = n*B+b)
    #   refs[1]  L_ref   : (B*N, B*N)    kron(L, I_B)
    #   per layer i (2)  : wcat (F_i, 2C) = [scale*W1^T | scale*W2^T],
    #                      shift (1, C)  = scale*(b1+b2) + bn_shift
    #   head (4)         : w_fc1t (N*C, H), b_fc1 (1, H), w_fc2t (H, O), b_fc2 (1, O)
    #   refs[-1] o_ref   : (B, O)
    h_ref, L_ref = refs[0], refs[1]
    layer_refs = refs[2:2 + 2 * NUM_LAYERS]
    w_fc1t_ref, b_fc1_ref, w_fc2t_ref, b_fc2_ref = refs[2 + 2 * NUM_LAYERS:-1]
    o_ref = refs[-1]

    L = L_ref[...]                                               # (B*N, B*N)
    h = h_ref[...]                                               # (B*N, F)

    # --- 5 GCN layers, statically unrolled; 2 MXU pushes per layer ----------
    for i in range(NUM_LAYERS):
        c = CFGS[i]
        wcat = layer_refs[2 * i][...]                            # (F_i, 2c)
        shift = layer_refs[2 * i + 1][...]                       # (1, c)
        # P = [h@ (scale*W1^T) | h@ (scale*W2^T)] in one MXU pass.
        p = jnp.dot(h, wcat, preferred_element_type=jnp.float32)         # (B*N, 2c)
        # L@(h@W1') == (L@h)@W1'  -> second (and last) MXU pass per layer.
        y = (jnp.dot(L, p[:, :c], preferred_element_type=jnp.float32)
             + p[:, c:] + shift)
        h = jnp.maximum(y, 0.0)                                  # ReLU
        # TODO(synk): Dropout omitted (identity in eval/inference mode).

    # --- MLP head: FC1 over the per-batch node-major flatten.  Computed as
    #     NODES *independent* (B, C) x (C, H) partial dots (no serial
    #     MXU->pop->add chain), reduced by a log-depth VPU tree sum. --------
    C = CFGS[-1]
    partials = [
        jnp.dot(h[n * BATCH:(n + 1) * BATCH, :],                 # (B, C)
                w_fc1t_ref[n * C:(n + 1) * C, :],                # (C, H)
                preferred_element_type=jnp.float32)              # -> (B, H)
        for n in range(NODES)
    ]
    while len(partials) > 1:                                     # depth log2(N)
        nxt = [partials[j] + partials[j + 1]
               for j in range(0, len(partials) - 1, 2)]
        if len(partials) % 2:
            nxt.append(partials[-1])
        partials = nxt
    hid = jnp.maximum(partials[0] + b_fc1_ref[...], 0.0)         # (B, H)

    o_ref[...] = (jnp.dot(hid, w_fc2t_ref[...],
                          preferred_element_type=jnp.float32)
                  + b_fc2_ref[...])                              # (B, O)


def gcn_forward_fused(h_fold, L_big, kparams):
    """h_fold: (B*N, F) node-major folded features; L_big: (B*N, B*N)."""
    inputs = [h_fold, L_big]
    for lyr in kparams["layers"]:
        inputs += [lyr["wcat"], lyr["shift"]]
    inputs += [kparams["w_fc1t"], kparams["b_fc1"],
               kparams["w_fc2t"], kparams["b_fc2"]]

    # Grid-less single-step call: every array is whole-array VMEM resident
    # (total ~100 KB f32 at these shapes), single DMA each, no grid overhead.
    return pl.pallas_call(
        fused_gcn_kernel,
        out_shape=jax.ShapeDtypeStruct((BATCH, NUM_CLASSES), jnp.float32),
    )(*inputs)


# ------------------------------ parameters -----------------------------------
def init_params(key):
    """Raw (PyTorch-equivalent) parameters; used by the pure-JAX reference."""
    params = {"gcn": []}
    in_f = IN_FEAT
    for c in CFGS:
        key, k1, k2, k3, k4, k5, k6, k7, k8 = jax.random.split(key, 9)
        lim = 1.0 / jnp.sqrt(in_f)
        w1 = jax.random.uniform(k1, (c, in_f), jnp.float32, -lim, lim)
        b1 = jax.random.uniform(k2, (1, c), jnp.float32, -lim, lim)
        w2 = jax.random.uniform(k3, (c, in_f), jnp.float32, -lim, lim)
        b2 = jax.random.uniform(k4, (1, c), jnp.float32, -lim, lim)
        # BatchNorm1d running stats / affine params (eval mode).
        gamma = 1.0 + 0.1 * jax.random.normal(k5, (1, c), jnp.float32)
        beta = 0.1 * jax.random.normal(k6, (1, c), jnp.float32)
        r_mean = 0.1 * jax.random.normal(k7, (1, c), jnp.float32)
        r_var = jnp.abs(1.0 + 0.1 * jax.random.normal(k8, (1, c), jnp.float32))
        bn_scale = gamma / jnp.sqrt(r_var + BN_EPS)
        bn_shift = beta - r_mean * bn_scale
        params["gcn"].append(dict(w1=w1, b1=b1, w2=w2, b2=b2,
                                  bn_scale=bn_scale, bn_shift=bn_shift))
        in_f = c

    key, k1, k2, k3, k4 = jax.random.split(key, 5)
    d_in = LAST_LAYER * CFGS[-1]
    lim = 1.0 / jnp.sqrt(d_in)
    params["w_fc1"] = jax.random.uniform(k1, (FC1_HIDDEN, d_in), jnp.float32, -lim, lim)
    params["b_fc1"] = jax.random.uniform(k2, (1, FC1_HIDDEN), jnp.float32, -lim, lim)
    lim = 1.0 / jnp.sqrt(FC1_HIDDEN)
    params["w_fc2"] = jax.random.uniform(k3, (NUM_CLASSES, FC1_HIDDEN), jnp.float32, -lim, lim)
    params["b_fc2"] = jax.random.uniform(k4, (1, NUM_CLASSES), jnp.float32, -lim, lim)
    return params


def fold_and_transpose(params):
    """One-time host-side prep: BN folded into weights, weights pre-transposed,
    per-layer W1/W2 lane-concatenated into a single (F, 2C) matrix."""
    kp = {"layers": []}
    for lyr in params["gcn"]:
        scale = lyr["bn_scale"]                                   # (1, C)
        w1t = lyr["w1"].T * scale                                 # (F, C) BN-scaled
        w2t = lyr["w2"].T * scale                                 # (F, C) BN-scaled
        wcat = jnp.concatenate([w1t, w2t], axis=1)                # (F, 2C)
        shift = scale * (lyr["b1"] + lyr["b2"]) + lyr["bn_shift"]  # (1, C)
        kp["layers"].append(dict(wcat=wcat, shift=shift))
    kp["w_fc1t"] = params["w_fc1"].T                              # (N*C, H)
    kp["b_fc1"] = params["b_fc1"]                                 # (1, H)
    kp["w_fc2t"] = params["w_fc2"].T                              # (H, O)
    kp["b_fc2"] = params["b_fc2"]                                 # (1, O)
    return kp


# --------------------------------- model -------------------------------------
@jax.jit
def model_forward(kparams, x, L):
    # x: (B, F, N) as in the PyTorch module (inputs[0]); L: (N, N) (inputs[1]).
    h = jnp.transpose(x, (0, 2, 1))                     # (B, N, F) == transpose(2,1)
    # Fold batch into sublanes, node-major row order: row n*B + b = x[b, n, :].
    h_fold = jnp.transpose(h, (1, 0, 2)).reshape(NODES * BATCH, IN_FEAT)
    L_big = jnp.kron(L, jnp.eye(BATCH, dtype=L.dtype))  # (N*B, N*B)
    return gcn_forward_fused(h_fold, L_big, kparams)


def model_forward_ref(params, x, L):
    # Pure-JAX reference (unfolded BN, unfused weights) for validation.
    h = jnp.transpose(x, (0, 2, 1))
    for layer in params["gcn"]:
        Lh = jnp.einsum("nm,bmf->bnf", L, h)
        y = Lh @ layer["w1"].T + layer["b1"] + h @ layer["w2"].T + layer["b2"]
        y = y * layer["bn_scale"] + layer["bn_shift"]
        h = jnp.maximum(y, 0.0)
    B = h.shape[0]
    h_flat = h.reshape(B, LAST_LAYER * CFGS[-1])
    h1 = jnp.maximum(h_flat @ params["w_fc1"].T + params["b_fc1"], 0.0)
    return h1 @ params["w_fc2"].T + params["b_fc2"]


if __name__ == "__main__":
    key = jax.random.PRNGKey(0)
    key, kx, kl, kp = jax.random.split(key, 4)

    x = jax.random.normal(kx, (BATCH, IN_FEAT, NODES), jnp.float32)   # inputs[0]
    L = jax.random.normal(kl, (NODES, NODES), jnp.float32) / NODES    # inputs[1]
    params = init_params(kp)
    kernel_params = fold_and_transpose(params)       # one-time host-side folding

    out = model_forward(kernel_params, x, L)
    out = jax.block_until_ready(out)
    assert out.shape == (BATCH, NUM_CLASSES), out.shape

    ref = model_forward_ref(params, x, L)
    assert jnp.allclose(out, ref, rtol=1e-3, atol=1e-4), \
        float(jnp.max(jnp.abs(out - ref)))

    print("KERNEL_OK")
</pallas_src>

<mosaic_0001>
module attributes {stable_mosaic.version = 11 : i64} {
  func.func @fused_gcn_kernel(%arg0: memref<16x16xf32, #tpu.memory_space<vmem>>, %arg1: memref<16x16xf32, #tpu.memory_space<vmem>>, %arg2: memref<16x64xf32, #tpu.memory_space<vmem>>, %arg3: memref<1x32xf32, #tpu.memory_space<vmem>>, %arg4: memref<32x64xf32, #tpu.memory_space<vmem>>, %arg5: memref<1x32xf32, #tpu.memory_space<vmem>>, %arg6: memref<32x64xf32, #tpu.memory_space<vmem>>, %arg7: memref<1x32xf32, #tpu.memory_space<vmem>>, %arg8: memref<32x64xf32, #tpu.memory_space<vmem>>, %arg9: memref<1x32xf32, #tpu.memory_space<vmem>>, %arg10: memref<32x64xf32, #tpu.memory_space<vmem>>, %arg11: memref<1x32xf32, #tpu.memory_space<vmem>>, %arg12: memref<256x64xf32, #tpu.memory_space<vmem>>, %arg13: memref<1x64xf32, #tpu.memory_space<vmem>>, %arg14: memref<64x20xf32, #tpu.memory_space<vmem>>, %arg15: memref<1x20xf32, #tpu.memory_space<vmem>>, %arg16: memref<2x20xf32, #tpu.memory_space<vmem>>) attributes {dimension_semantics = [], scalar_prefetch = 0 : i64, scratch_operands = 0 : i64, tpu.core_type = #tpu.core_type<tc>} {
    %c0 = arith.constant 0 : index
    %c0_0 = arith.constant 0 : index
    %0 = vector.load %arg1[%c0, %c0_0] : memref<16x16xf32, #tpu.memory_space<vmem>>, vector<16x16xf32>
    %c0_1 = arith.constant 0 : index
    %c0_2 = arith.constant 0 : index
    %1 = vector.load %arg0[%c0_1, %c0_2] : memref<16x16xf32, #tpu.memory_space<vmem>>, vector<16x16xf32>
    %c0_3 = arith.constant 0 : index
    %c0_4 = arith.constant 0 : index
    %2 = vector.load %arg2[%c0_3, %c0_4] : memref<16x64xf32, #tpu.memory_space<vmem>>, vector<16x64xf32>
    %c0_5 = arith.constant 0 : index
    %c0_6 = arith.constant 0 : index
    %3 = vector.load %arg3[%c0_5, %c0_6] : memref<1x32xf32, #tpu.memory_space<vmem>>, vector<1x32xf32>
    %cst = arith.constant dense<0.000000e+00> : vector<16x64xf32>
    %4 = tpu.matmul %1, %2, %cst {dimension_numbers = #tpu.dot_dimension_numbers<[1], [0], [0], [1], [0, 0, 1, 1], [], []>} : vector<16x16xf32>, vector<16x64xf32>, vector<16x64xf32> -> vector<16x64xf32>
    %5 = vector.extract_strided_slice %4 {offsets = [0, 0], sizes = [16, 32], strides = [1, 1]} : vector<16x64xf32> to vector<16x32xf32>
    %cst_7 = arith.constant dense<0.000000e+00> : vector<16x32xf32>
    %6 = tpu.matmul %0, %5, %cst_7 {dimension_numbers = #tpu.dot_dimension_numbers<[1], [0], [0], [1], [0, 0, 1, 1], [], []>} : vector<16x16xf32>, vector<16x32xf32>, vector<16x32xf32> -> vector<16x32xf32>
    %7 = vector.extract_strided_slice %4 {offsets = [0, 32], sizes = [16, 32], strides = [1, 1]} : vector<16x64xf32> to vector<16x32xf32>
    %8 = arith.addf %6, %7 : vector<16x32xf32>
    %9 = vector.broadcast %3 : vector<1x32xf32> to vector<16x32xf32>
    %10 = arith.addf %8, %9 : vector<16x32xf32>
    %cst_8 = arith.constant 0.000000e+00 : f32
    %11 = vector.broadcast %cst_8 : f32 to vector<16x32xf32>
    %12 = arith.maximumf %10, %11 : vector<16x32xf32>
    %c0_9 = arith.constant 0 : index
    %c0_10 = arith.constant 0 : index
    %13 = vector.load %arg4[%c0_9, %c0_10] : memref<32x64xf32, #tpu.memory_space<vmem>>, vector<32x64xf32>
    %c0_11 = arith.constant 0 : index
    %c0_12 = arith.constant 0 : index
    %14 = vector.load %arg5[%c0_11, %c0_12] : memref<1x32xf32, #tpu.memory_space<vmem>>, vector<1x32xf32>
    %cst_13 = arith.constant dense<0.000000e+00> : vector<16x64xf32>
    %15 = tpu.matmul %12, %13, %cst_13 {dimension_numbers = #tpu.dot_dimension_numbers<[1], [0], [0], [1], [0, 0, 1, 1], [], []>} : vector<16x32xf32>, vector<32x64xf32>, vector<16x64xf32> -> vector<16x64xf32>
    %16 = vector.extract_strided_slice %15 {offsets = [0, 0], sizes = [16, 32], strides = [1, 1]} : vector<16x64xf32> to vector<16x32xf32>
    %cst_14 = arith.constant dense<0.000000e+00> : vector<16x32xf32>
    %17 = tpu.matmul %0, %16, %cst_14 {dimension_numbers = #tpu.dot_dimension_numbers<[1], [0], [0], [1], [0, 0, 1, 1], [], []>} : vector<16x16xf32>, vector<16x32xf32>, vector<16x32xf32> -> vector<16x32xf32>
    %18 = vector.extract_strided_slice %15 {offsets = [0, 32], sizes = [16, 32], strides = [1, 1]} : vector<16x64xf32> to vector<16x32xf32>
    %19 = arith.addf %17, %18 : vector<16x32xf32>
    %20 = vector.broadcast %14 : vector<1x32xf32> to vector<16x32xf32>
    %21 = arith.addf %19, %20 : vector<16x32xf32>
    %cst_15 = arith.constant 0.000000e+00 : f32
    %22 = vector.broadcast %cst_15 : f32 to vector<16x32xf32>
    %23 = arith.maximumf %21, %22 : vector<16x32xf32>
    %c0_16 = arith.constant 0 : index
    %c0_17 = arith.constant 0 : index
    %24 = vector.load %arg6[%c0_16, %c0_17] : memref<32x64xf32, #tpu.memory_space<vmem>>, vector<32x64xf32>
    %c0_18 = arith.constant 0 : index
    %c0_19 = arith.constant 0 : index
    %25 = vector.load %arg7[%c0_18, %c0_19] : memref<1x32xf32, #tpu.memory_space<vmem>>, vector<1x32xf32>
    %cst_20 = arith.constant dense<0.000000e+00> : vector<16x64xf32>
    %26 = tpu.matmul %23, %24, %cst_20 {dimension_numbers = #tpu.dot_dimension_numbers<[1], [0], [0], [1], [0, 0, 1, 1], [], []>} : vector<16x32xf32>, vector<32x64xf32>, vector<16x64xf32> -> vector<16x64xf32>
    %27 = vector.extract_strided_slice %26 {offsets = [0, 0], sizes = [16, 32], strides = [1, 1]} : vector<16x64xf32> to vector<16x32xf32>
    %cst_21 = arith.constant dense<0.000000e+00> : vector<16x32xf32>
    %28 = tpu.matmul %0, %27, %cst_21 {dimension_numbers = #tpu.dot_dimension_numbers<[1], [0], [0], [1], [0, 0, 1, 1], [], []>} : vector<16x16xf32>, vector<16x32xf32>, vector<16x32xf32> -> vector<16x32xf32>
    %29 = vector.extract_strided_slice %26 {offsets = [0, 32], sizes = [16, 32], strides = [1, 1]} : vector<16x64xf32> to vector<16x32xf32>
    %30 = arith.addf %28, %29 : vector<16x32xf32>
    %31 = vector.broadcast %25 : vector<1x32xf32> to vector<16x32xf32>
    %32 = arith.addf %30, %31 : vector<16x32xf32>
    %cst_22 = arith.constant 0.000000e+00 : f32
    %33 = vector.broadcast %cst_22 : f32 to vector<16x32xf32>
    %34 = arith.maximumf %32, %33 : vector<16x32xf32>
    %c0_23 = arith.constant 0 : index
    %c0_24 = arith.constant 0 : index
    %35 = vector.load %arg8[%c0_23, %c0_24] : memref<32x64xf32, #tpu.memory_space<vmem>>, vector<32x64xf32>
    %c0_25 = arith.constant 0 : index
    %c0_26 = arith.constant 0 : index
    %36 = vector.load %arg9[%c0_25, %c0_26] : memref<1x32xf32, #tpu.memory_space<vmem>>, vector<1x32xf32>
    %cst_27 = arith.constant dense<0.000000e+00> : vector<16x64xf32>
    %37 = tpu.matmul %34, %35, %cst_27 {dimension_numbers = #tpu.dot_dimension_numbers<[1], [0], [0], [1], [0, 0, 1, 1], [], []>} : vector<16x32xf32>, vector<32x64xf32>, vector<16x64xf32> -> vector<16x64xf32>
    %38 = vector.extract_strided_slice %37 {offsets = [0, 0], sizes = [16, 32], strides = [1, 1]} : vector<16x64xf32> to vector<16x32xf32>
    %cst_28 = arith.constant dense<0.000000e+00> : vector<16x32xf32>
    %39 = tpu.matmul %0, %38, %cst_28 {dimension_numbers = #tpu.dot_dimension_numbers<[1], [0], [0], [1], [0, 0, 1, 1], [], []>} : vector<16x16xf32>, vector<16x32xf32>, vector<16x32xf32> -> vector<16x32xf32>
    %40 = vector.extract_strided_slice %37 {offsets = [0, 32], sizes = [16, 32], strides = [1, 1]} : vector<16x64xf32> to vector<16x32xf32>
    %41 = arith.addf %39, %40 : vector<16x32xf32>
    %42 = vector.broadcast %36 : vector<1x32xf32> to vector<16x32xf32>
    %43 = arith.addf %41, %42 : vector<16x32xf32>
    %cst_29 = arith.constant 0.000000e+00 : f32
    %44 = vector.broadcast %cst_29 : f32 to vector<16x32xf32>
    %45 = arith.maximumf %43, %44 : vector<16x32xf32>
    %c0_30 = arith.constant 0 : index
    %c0_31 = arith.constant 0 : index
    %46 = vector.load %arg10[%c0_30, %c0_31] : memref<32x64xf32, #tpu.memory_space<vmem>>, vector<32x64xf32>
    %c0_32 = arith.constant 0 : index
    %c0_33 = arith.constant 0 : index
    %47 = vector.load %arg11[%c0_32, %c0_33] : memref<1x32xf32, #tpu.memory_space<vmem>>, vector<1x32xf32>
    %cst_34 = arith.constant dense<0.000000e+00> : vector<16x64xf32>
    %48 = tpu.matmul %45, %46, %cst_34 {dimension_numbers = #tpu.dot_dimension_numbers<[1], [0], [0], [1], [0, 0, 1, 1], [], []>} : vector<16x32xf32>, vector<32x64xf32>, vector<16x64xf32> -> vector<16x64xf32>
    %49 = vector.extract_strided_slice %48 {offsets = [0, 0], sizes = [16, 32], strides = [1, 1]} : vector<16x64xf32> to vector<16x32xf32>
    %cst_35 = arith.constant dense<0.000000e+00> : vector<16x32xf32>
    %50 = tpu.matmul %0, %49, %cst_35 {dimension_numbers = #tpu.dot_dimension_numbers<[1], [0], [0], [1], [0, 0, 1, 1], [], []>} : vector<16x16xf32>, vector<16x32xf32>, vector<16x32xf32> -> vector<16x32xf32>
    %51 = vector.extract_strided_slice %48 {offsets = [0, 32], sizes = [16, 32], strides = [1, 1]} : vector<16x64xf32> to vector<16x32xf32>
    %52 = arith.addf %50, %51 : vector<16x32xf32>
    %53 = vector.broadcast %47 : vector<1x32xf32> to vector<16x32xf32>
    %54 = arith.addf %52, %53 : vector<16x32xf32>
    %cst_36 = arith.constant 0.000000e+00 : f32
    %55 = vector.broadcast %cst_36 : f32 to vector<16x32xf32>
    %56 = arith.maximumf %54, %55 : vector<16x32xf32>
    %57 = vector.extract_strided_slice %56 {offsets = [0, 0], sizes = [2, 32], strides = [1, 1]} : vector<16x32xf32> to vector<2x32xf32>
    %c0_37 = arith.constant 0 : index
    %c0_38 = arith.constant 0 : index
    %58 = vector.load %arg12[%c0_37, %c0_38] : memref<256x64xf32, #tpu.memory_space<vmem>>, vector<32x64xf32>
    %cst_39 = arith.constant dense<0.000000e+00> : vector<2x64xf32>
    %59 = tpu.matmul %57, %58, %cst_39 {dimension_numbers = #tpu.dot_dimension_numbers<[1], [0], [0], [1], [0, 0, 1, 1], [], []>} : vector<2x32xf32>, vector<32x64xf32>, vector<2x64xf32> -> vector<2x64xf32>
    %60 = vector.extract_strided_slice %56 {offsets = [2, 0], sizes = [2, 32], strides = [1, 1]} : vector<16x32xf32> to vector<2x32xf32>
    %c32 = arith.constant 32 : index
    %c0_40 = arith.constant 0 : index
    %61 = vector.load %arg12[%c32, %c0_40] : memref<256x64xf32, #tpu.memory_space<vmem>>, vector<32x64xf32>
    %cst_41 = arith.constant dense<0.000000e+00> : vector<2x64xf32>
    %62 = tpu.matmul %60, %61, %cst_41 {dimension_numbers = #tpu.dot_dimension_numbers<[1], [0], [0], [1], [0, 0, 1, 1], [], []>} : vector<2x32xf32>, vector<32x64xf32>, vector<2x64xf32> -> vector<2x64xf32>
    %63 = vector.extract_strided_slice %56 {offsets = [4, 0], sizes = [2, 32], strides = [1, 1]} : vector<16x32xf32> to vector<2x32xf32>
    %c64 = arith.constant 64 : index
    %c0_42 = arith.constant 0 : index
    %64 = vector.load %arg12[%c64, %c0_42] : memref<256x64xf32, #tpu.memory_space<vmem>>, vector<32x64xf32>
    %cst_43 = arith.constant dense<0.000000e+00> : vector<2x64xf32>
    %65 = tpu.matmul %63, %64, %cst_43 {dimension_numbers = #tpu.dot_dimension_numbers<[1], [0], [0], [1], [0, 0, 1, 1], [], []>} : vector<2x32xf32>, vector<32x64xf32>, vector<2x64xf32> -> vector<2x64xf32>
    %66 = vector.extract_strided_slice %56 {offsets = [6, 0], sizes = [2, 32], strides = [1, 1]} : vector<16x32xf32> to vector<2x32xf32>
    %c96 = arith.constant 96 : index
    %c0_44 = arith.constant 0 : index
    %67 = vector.load %arg12[%c96, %c0_44] : memref<256x64xf32, #tpu.memory_space<vmem>>, vector<32x64xf32>
    %cst_45 = arith.constant dense<0.000000e+00> : vector<2x64xf32>
    %68 = tpu.matmul %66, %67, %cst_45 {dimension_numbers = #tpu.dot_dimension_numbers<[1], [0], [0], [1], [0, 0, 1, 1], [], []>} : vector<2x32xf32>, vector<32x64xf32>, vector<2x64xf32> -> vector<2x64xf32>
    %69 = vector.extract_strided_slice %56 {offsets = [8, 0], sizes = [2, 32], strides = [1, 1]} : vector<16x32xf32> to vector<2x32xf32>
    %c128 = arith.constant 128 : index
    %c0_46 = arith.constant 0 : index
    %70 = vector.load %arg12[%c128, %c0_46] : memref<256x64xf32, #tpu.memory_space<vmem>>, vector<32x64xf32>
    %cst_47 = arith.constant dense<0.000000e+00> : vector<2x64xf32>
    %71 = tpu.matmul %69, %70, %cst_47 {dimension_numbers = #tpu.dot_dimension_numbers<[1], [0], [0], [1], [0, 0, 1, 1], [], []>} : vector<2x32xf32>, vector<32x64xf32>, vector<2x64xf32> -> vector<2x64xf32>
    %72 = vector.extract_strided_slice %56 {offsets = [10, 0], sizes = [2, 32], strides = [1, 1]} : vector<16x32xf32> to vector<2x32xf32>
    %c160 = arith.constant 160 : index
    %c0_48 = arith.constant 0 : index
    %73 = vector.load %arg12[%c160, %c0_48] : memref<256x64xf32, #tpu.memory_space<vmem>>, vector<32x64xf32>
    %cst_49 = arith.constant dense<0.000000e+00> : vector<2x64xf32>
    %74 = tpu.matmul %72, %73, %cst_49 {dimension_numbers = #tpu.dot_dimension_numbers<[1], [0], [0], [1], [0, 0, 1, 1], [], []>} : vector<2x32xf32>, vector<32x64xf32>, vector<2x64xf32> -> vector<2x64xf32>
    %75 = vector.extract_strided_slice %56 {offsets = [12, 0], sizes = [2, 32], strides = [1, 1]} : vector<16x32xf32> to vector<2x32xf32>
    %c192 = arith.constant 192 : index
    %c0_50 = arith.constant 0 : index
    %76 = vector.load %arg12[%c192, %c0_50] : memref<256x64xf32, #tpu.memory_space<vmem>>, vector<32x64xf32>
    %cst_51 = arith.constant dense<0.000000e+00> : vector<2x64xf32>
    %77 = tpu.matmul %75, %76, %cst_51 {dimension_numbers = #tpu.dot_dimension_numbers<[1], [0], [0], [1], [0, 0, 1, 1], [], []>} : vector<2x32xf32>, vector<32x64xf32>, vector<2x64xf32> -> vector<2x64xf32>
    %78 = vector.extract_strided_slice %56 {offsets = [14, 0], sizes = [2, 32], strides = [1, 1]} : vector<16x32xf32> to vector<2x32xf32>
    %c224 = arith.constant 224 : index
    %c0_52 = arith.constant 0 : index
    %79 = vector.load %arg12[%c224, %c0_52] : memref<256x64xf32, #tpu.memory_space<vmem>>, vector<32x64xf32>
    %cst_53 = arith.constant dense<0.000000e+00> : vector<2x64xf32>
    %80 = tpu.matmul %78, %79, %cst_53 {dimension_numbers = #tpu.dot_dimension_numbers<[1], [0], [0], [1], [0, 0, 1, 1], [], []>} : vector<2x32xf32>, vector<32x64xf32>, vector<2x64xf32> -> vector<2x64xf32>
    %81 = arith.addf %59, %62 : vector<2x64xf32>
    %82 = arith.addf %65, %68 : vector<2x64xf32>
    %83 = arith.addf %71, %74 : vector<2x64xf32>
    %84 = arith.addf %77, %80 : vector<2x64xf32>
    %85 = arith.addf %81, %82 : vector<2x64xf32>
    %86 = arith.addf %83, %84 : vector<2x64xf32>
    %87 = arith.addf %85, %86 : vector<2x64xf32>
    %c0_54 = arith.constant 0 : index
    %c0_55 = arith.constant 0 : index
    %88 = vector.load %arg13[%c0_54, %c0_55] : memref<1x64xf32, #tpu.memory_space<vmem>>, vector<1x64xf32>
    %89 = vector.broadcast %88 : vector<1x64xf32> to vector<2x64xf32>
    %90 = arith.addf %87, %89 : vector<2x64xf32>
    %cst_56 = arith.constant 0.000000e+00 : f32
    %91 = vector.broadcast %cst_56 : f32 to vector<2x64xf32>
    %92 = arith.maximumf %90, %91 : vector<2x64xf32>
    %c0_57 = arith.constant 0 : index
    %c0_58 = arith.constant 0 : index
    %93 = vector.load %arg14[%c0_57, %c0_58] : memref<64x20xf32, #tpu.memory_space<vmem>>, vector<64x20xf32>
    %cst_59 = arith.constant dense<0.000000e+00> : vector<2x20xf32>
    %94 = tpu.matmul %92, %93, %cst_59 {dimension_numbers = #tpu.dot_dimension_numbers<[1], [0], [0], [1], [0, 0, 1, 1], [], []>} : vector<2x64xf32>, vector<64x20xf32>, vector<2x20xf32> -> vector<2x20xf32>
    %c0_60 = arith.constant 0 : index
    %c0_61 = arith.constant 0 : index
    %95 = vector.load %arg15[%c0_60, %c0_61] : memref<1x20xf32, #tpu.memory_space<vmem>>, vector<1x20xf32>
    %96 = vector.broadcast %95 : vector<1x20xf32> to vector<2x20xf32>
    %97 = arith.addf %94, %96 : vector<2x20xf32>
    %c0_62 = arith.constant 0 : index
    %c0_63 = arith.constant 0 : index
    %98 = vector.load %arg16[%c0_62, %c0_63] : memref<2x20xf32, #tpu.memory_space<vmem>>, vector<2x20xf32>
    tpu.vector_store %arg16[%c0_62, %c0_63], %97 {strides = array<i32>} : memref<2x20xf32, #tpu.memory_space<vmem>>, vector<2x20xf32>,
    return
  }
}

</mosaic_0001>

<llo_original>
// kernel: model_forward.1
$region0: #{model_forward.1}
  #allocation0 [shape = 'u32[]', space=smem, size = 0x4, offset = 0x4, fixed_abs, tag = 'smem constant byte address 0x4 - core index']
  #allocation1 [shape = 'u32[144,128]{1,0:T(1,128)}', space=vmem, size = 0x12000, scoped, tag = 'internal scratch']
  %s0 = inlined_call_operand.vmem [shape: f32[16,16], index: 0, kind: input, shape index: {}]
  %s1 = inlined_call_operand.vmem [shape: f32[16,16], index: 1, kind: input, shape index: {}]
  %s2 = inlined_call_operand.vmem [shape: f32[16,64], index: 2, kind: input, shape index: {}]
  %s3 = inlined_call_operand.vmem [shape: f32[1,32], index: 3, kind: input, shape index: {}]
  %s4 = inlined_call_operand.vmem [shape: f32[32,64], index: 4, kind: input, shape index: {}]
  %s5 = inlined_call_operand.vmem [shape: f32[1,32], index: 5, kind: input, shape index: {}]
  %s6 = inlined_call_operand.vmem [shape: f32[32,64], index: 6, kind: input, shape index: {}]
  %s7 = inlined_call_operand.vmem [shape: f32[1,32], index: 7, kind: input, shape index: {}]
  %s8 = inlined_call_operand.vmem [shape: f32[32,64], index: 8, kind: input, shape index: {}]
  %s9 = inlined_call_operand.vmem [shape: f32[1,32], index: 9, kind: input, shape index: {}]
  %s10 = inlined_call_operand.vmem [shape: f32[32,64], index: 10, kind: input, shape index: {}]
  %s11 = inlined_call_operand.vmem [shape: f32[1,32], index: 11, kind: input, shape index: {}]
  %s12 = inlined_call_operand.vmem [shape: f32[256,64], index: 12, kind: input, shape index: {}]
  %s13 = inlined_call_operand.vmem [shape: f32[1,64], index: 13, kind: input, shape index: {}]
  %s14 = inlined_call_operand.vmem [shape: f32[64,20], index: 14, kind: input, shape index: {}]
  %s15 = inlined_call_operand.vmem [shape: f32[1,20], index: 15, kind: input, shape index: {}]
  %s16 = inlined_call_operand.hbm [shape: f32[2,20], index: 16, kind: output, shape index: {}]
  %s17 = sld [smem:[#allocation0]]
  $region74: #{model_forward.1} parent=0
    _
  %s19 = ssub.s32 1, %s17
  %s20 = scalar_select 0, %s19, %s17
  $region1: #{model_forward.1} parent=0
    #allocation2 [shape = 'u8[1024]{0}', space=vmem, size = 0x400, scoped, tag = 'output window, operand 0, single buffered']
    #allocation3 [shape = 's32[1]{0}', space=sflag, size = 0x4, scoped, tag = 'scoped memory for model_forward.1']
    %21 = vsyncpa [#allocation3], 0
    // Predicated region
    $region2: #{model_forward.1} parent=1 // pred_check
      _
    $region3: #{model_forward.1} parent=1 // pred_check_branch
      %23 = sbr.rel (0) target = $region5
    $region4: #{model_forward.1} parent=1 // pred_region
      _
    $region5: #{model_forward.1} parent=1 // pred_fallthru
      _
    // Predicated region
    $region6: #{model_forward.1} parent=1 // pred_check
      _
    $region7: #{model_forward.1} parent=1 // pred_check_branch
      %25 = sbr.rel (0) target = $region9
    $region8: #{model_forward.1} parent=1 // pred_region
      _
    $region9: #{model_forward.1} parent=1 // pred_fallthru
      _
    // Predicated region
    $region10: #{model_forward.1} parent=1 // pred_check
      _
    $region11: #{model_forward.1} parent=1 // pred_check_branch
      %27 = sbr.rel (0) target = $region13
    $region12: #{model_forward.1} parent=1 // pred_region
      _
    $region13: #{model_forward.1} parent=1 // pred_fallthru
      _
    // Predicated region
    $region14: #{model_forward.1} parent=1 // pred_check
      _
    $region15: #{model_forward.1} parent=1 // pred_check_branch
      %29 = sbr.rel (0) target = $region17
    $region16: #{model_forward.1} parent=1 // pred_region
      _
    $region17: #{model_forward.1} parent=1 // pred_fallthru
      _
    // Predicated region
    $region18: #{model_forward.1} parent=1 // pred_check
      _
    $region19: #{model_forward.1} parent=1 // pred_check_branch
      %31 = sbr.rel (0) target = $region21
    $region20: #{model_forward.1} parent=1 // pred_region
      _
    $region21: #{model_forward.1} parent=1 // pred_fallthru
      _
    // Predicated region
    $region22: #{model_forward.1} parent=1 // pred_check
      _
    $region23: #{model_forward.1} parent=1 // pred_check_branch
      %33 = sbr.rel (0) target = $region25
    $region24: #{model_forward.1} parent=1 // pred_region
      _
    $region25: #{model_forward.1} parent=1 // pred_fallthru
      _
    // Predicated region
    $region26: #{model_forward.1} parent=1 // pred_check
      _
    $region27: #{model_forward.1} parent=1 // pred_check_branch
      %35 = sbr.rel (0) target = $region29
    $region28: #{model_forward.1} parent=1 // pred_region
      _
    $region29: #{model_forward.1} parent=1 // pred_fallthru
      _
    // Predicated region
    $region30: #{model_forward.1} parent=1 // pred_check
      _
    $region31: #{model_forward.1} parent=1 // pred_check_branch
      %37 = sbr.rel (0) target = $region33
    $region32: #{model_forward.1} parent=1 // pred_region
      _
    $region33: #{model_forward.1} parent=1 // pred_fallthru
      _
    // Predicated region
    $region34: #{model_forward.1} parent=1 // pred_check
      _
    $region35: #{model_forward.1} parent=1 // pred_check_branch
      %39 = sbr.rel (0) target = $region37
    $region36: #{model_forward.1} parent=1 // pred_region
      _
    $region37: #{model_forward.1} parent=1 // pred_fallthru
      _
    // Predicated region
    $region38: #{model_forward.1} parent=1 // pred_check
      _
    $region39: #{model_forward.1} parent=1 // pred_check_branch
      %41 = sbr.rel (0) target = $region41
    $region40: #{model_forward.1} parent=1 // pred_region
      _
    $region41: #{model_forward.1} parent=1 // pred_fallthru
      _
    // Predicated region
    $region42: #{model_forward.1} parent=1 // pred_check
      _
    $region43: #{model_forward.1} parent=1 // pred_check_branch
      %43 = sbr.rel (0) target = $region45
    $region44: #{model_forward.1} parent=1 // pred_region
      _
    $region45: #{model_forward.1} parent=1 // pred_fallthru
      _
    // Predicated region
    $region46: #{model_forward.1} parent=1 // pred_check
      _
    $region47: #{model_forward.1} parent=1 // pred_check_branch
      %45 = sbr.rel (0) target = $region49
    $region48: #{model_forward.1} parent=1 // pred_region
      _
    $region49: #{model_forward.1} parent=1 // pred_fallthru
      _
    // Predicated region
    $region50: #{model_forward.1} parent=1 // pred_check
      _
    $region51: #{model_forward.1} parent=1 // pred_check_branch
      %47 = sbr.rel (0) target = $region53
    $region52: #{model_forward.1} parent=1 // pred_region
      _
    $region53: #{model_forward.1} parent=1 // pred_fallthru
      _
    // Predicated region
    $region54: #{model_forward.1} parent=1 // pred_check
      _
    $region55: #{model_forward.1} parent=1 // pred_check_branch
      %49 = sbr.rel (0) target = $region57
    $region56: #{model_forward.1} parent=1 // pred_region
      _
    $region57: #{model_forward.1} parent=1 // pred_fallthru
      _
    // Predicated region
    $region58: #{model_forward.1} parent=1 // pred_check
      _
    $region59: #{model_forward.1} parent=1 // pred_check_branch
      %51 = sbr.rel (0) target = $region61
    $region60: #{model_forward.1} parent=1 // pred_region
      _
    $region61: #{model_forward.1} parent=1 // pred_fallthru
      _
    // Predicated region
    $region62: #{model_forward.1} parent=1 // pred_check
      _
    $region63: #{model_forward.1} parent=1 // pred_check_branch
      %53 = sbr.rel (0) target = $region65
    $region64: #{model_forward.1} parent=1 // pred_region
      _
    $region65: #{model_forward.1} parent=1 // pred_fallthru
      _
    %v54 = vld [vmem:[%s1] sm:$0xff]
    %v55 = vld [vmem:[%s1 + $0x8] sm:$0xff]
    %v56 = vld [vmem:[%s0] sm:$0xff]
    %v57 = vld [vmem:[%s0 + $0x8] sm:$0xff]
    %v58 = vld [vmem:[%s2] sm:$0xff]
    %v59 = vld [vmem:[%s2 + $0x8] sm:$0xff]
    %v60 = vld [vmem:[%s3] sm:$0x1]
    %vm61 = vcmask 130048
    %v63 = vsel %vm61, %v56, 0
    %v66 = vsel %vm61, %v57, 0
    %68 = vmatprep.subr.mxu0 0.0
    %69 = vmatpush1.msra.mxu0 %v58
    %70 = vmatprep.subr.mxu0 0.0
    %71 = vmatpush1.msra.mxu0 %v59
    %72 = vmatprep.subr.mxu0 0.0
    %73 = vmatpush1.msra.mxu0 0.0
    %74 = vmatprep.subr.mxu0 0.0
    %75 = vmatpush1.msra.mxu0 0.0
    %76 = vmatprep.subr.mxu0 0.0
    %77 = vmatpush1.msra.mxu0 0.0
    %78 = vmatprep.subr.mxu0 0.0
    %79 = vmatpush1.msra.mxu0 0.0
    %80 = vmatprep.subr.mxu0 0.0
    %81 = vmatpush1.msra.mxu0 0.0
    %82 = vmatprep.subr.mxu0 0.0
    %83 = vmatpush1.msra.mxu0 0.0
    %84 = vmatprep.subr.mxu0 0.0
    %85 = vmatpush1.msra.mxu0 0.0
    %86 = vmatprep.subr.mxu0 0.0
    %87 = vmatpush1.msra.mxu0 0.0
    %88 = vmatprep.subr.mxu0 0.0
    %89 = vmatpush1.msra.mxu0 0.0
    %90 = vmatprep.subr.mxu0 0.0
    %91 = vmatpush1.msra.mxu0 0.0
    %92 = vmatprep.subr.mxu0 0.0
    %93 = vmatpush1.msra.mxu0 0.0
    %94 = vmatprep.subr.mxu0 0.0
    %95 = vmatpush1.msra.mxu0 0.0
    %96 = vmatprep.subr.mxu0 0.0
    %97 = vmatpush1.msra.mxu0 0.0
    %98 = vmatprep.subr.mxu0 0.0
    %99 = vmatpush1.msra.mxu0 0.0
    %100 = vmatprep.subr.mxu0 0.0
    %101 = vmatpush1.msra.mxu0 0.0
    %102 = vmatprep.subr.mxu0 0.0
    %103 = vmatpush1.msra.mxu0 0.0
    %104 = vmatprep.subr.mxu0 0.0
    %105 = vmatpush1.msra.mxu0 0.0
    %106 = vmatprep.subr.mxu0 0.0
    %107 = vmatpush1.msra.mxu0 0.0
    %108 = vmatprep.subr.mxu0 0.0
    %109 = vmatpush1.msra.mxu0 0.0
    %110 = vmatprep.subr.mxu0 0.0
    %111 = vmatpush1.msra.mxu0 0.0
    %112 = vmatprep.subr.mxu0 0.0
    %113 = vmatpush1.msra.mxu0 0.0
    %114 = vmatprep.subr.mxu0 0.0
    %115 = vmatpush1.msra.mxu0 0.0
    %116 = vmatprep.subr.mxu0 0.0
    %117 = vmatpush1.msra.mxu0 0.0
    %118 = vmatprep.subr.mxu0 0.0
    %119 = vmatpush1.msra.mxu0 0.0
    %120 = vmatprep.subr.mxu0 0.0
    %121 = vmatpush1.msra.mxu0 0.0
    %122 = vmatprep.subr.mxu0 0.0
    %123 = vmatpush1.msra.mxu0 0.0
    %124 = vmatprep.subr.mxu0 0.0
    %125 = vmatpush1.msra.mxu0 0.0
    %126 = vmatprep.subr.mxu0 0.0
    %127 = vmatpush1.msra.mxu0 0.0
    %128 = vmatprep.subr.mxu0 0.0
    %129 = vmatpush1.msra.mxu0 0.0
    %130 = vmatprep.subr.mxu0 0.0
    %131 = vmatpush1.msra.mxu0 0.0
    %132 = vmatprep.mubr.f32.mxu0 0.0
    %133 = vmatmul.mubr.f32.gmra.mrb[0].mxu0 %v63
    %v134 = vpop.f32.mrb[0].mxu0
    %v135 = vadd.f32 0.0, %v134
    %v136 = vpop.f32.mrb[0].mxu0
    %137 = vmatprep.mubr.f32.mxu0 0.0
    %138 = vmatmul.mubr.f32.gmra.mrb[0].mxu0 %v66
    %v139 = vpop.f32.mrb[0].mxu0
    %v140 = vadd.f32 0.0, %v139
    %v141 = vpop.f32.mrb[0].mxu0
    %142 = vdwg.mxu0
    %145 = vrot.lane.b32.xlu0 %v135, 96
    %v146 = vpop.permute.xlu0 %145
    %147 = vrot.lane.b32.xlu0 %v140, 96
    %v148 = vpop.permute.xlu0 %147
    %v152 = vsel %vm61, %v54, 0
    %v155 = vsel %vm61, %v55, 0
    %157 = vmatprep.subr.mxu0 0.0
    %158 = vmatpush1.msra.mxu0 %v135
    %159 = vmatprep.subr.mxu0 0.0
    %160 = vmatpush1.msra.mxu0 %v140
    %161 = vmatprep.subr.mxu0 0.0
    %162 = vmatpush1.msra.mxu0 0.0
    %163 = vmatprep.subr.mxu0 0.0
    %164 = vmatpush1.msra.mxu0 0.0
    %165 = vmatprep.subr.mxu0 0.0
    %166 = vmatpush1.msra.mxu0 0.0
    %167 = vmatprep.subr.mxu0 0.0
    %168 = vmatpush1.msra.mxu0 0.0
    %169 = vmatprep.subr.mxu0 0.0
    %170 = vmatpush1.msra.mxu0 0.0
    %171 = vmatprep.subr.mxu0 0.0
    %172 = vmatpush1.msra.mxu0 0.0
    %173 = vmatprep.subr.mxu0 0.0
    %174 = vmatpush1.msra.mxu0 0.0
    %175 = vmatprep.subr.mxu0 0.0
    %176 = vmatpush1.msra.mxu0 0.0
    %177 = vmatprep.subr.mxu0 0.0
    %178 = vmatpush1.msra.mxu0 0.0
    %179 = vmatprep.subr.mxu0 0.0
    %180 = vmatpush1.msra.mxu0 0.0
    %181 = vmatprep.subr.mxu0 0.0
    %182 = vmatpush1.msra.mxu0 0.0
    %183 = vmatprep.subr.mxu0 0.0
    %184 = vmatpush1.msra.mxu0 0.0
    %185 = vmatprep.subr.mxu0 0.0
    %186 = vmatpush1.msra.mxu0 0.0
    %187 = vmatprep.subr.mxu0 0.0
    %188 = vmatpush1.msra.mxu0 0.0
    %189 = vmatprep.subr.mxu0 0.0
    %190 = vmatpush1.msra.mxu0 0.0
    %191 = vmatprep.subr.mxu0 0.0
    %192 = vmatpush1.msra.mxu0 0.0
    %193 = vmatprep.subr.mxu0 0.0
    %194 = vmatpush1.msra.mxu0 0.0
    %195 = vmatprep.subr.mxu0 0.0
    %196 = vmatpush1.msra.mxu0 0.0
    %197 = vmatprep.subr.mxu0 0.0
    %198 = vmatpush1.msra.mxu0 0.0
    %199 = vmatprep.subr.mxu0 0.0
    %200 = vmatpush1.msra.mxu0 0.0
    %201 = vmatprep.subr.mxu0 0.0
    %202 = vmatpush1.msra.mxu0 0.0
    %203 = vmatprep.subr.mxu0 0.0
    %204 = vmatpush1.msra.mxu0 0.0
    %205 = vmatprep.subr.mxu0 0.0
    %206 = vmatpush1.msra.mxu0 0.0
    %207 = vmatprep.subr.mxu0 0.0
    %208 = vmatpush1.msra.mxu0 0.0
    %209 = vmatprep.subr.mxu0 0.0
    %210 = vmatpush1.msra.mxu0 0.0
    %211 = vmatprep.subr.mxu0 0.0
    %212 = vmatpush1.msra.mxu0 0.0
    %213 = vmatprep.subr.mxu0 0.0
    %214 = vmatpush1.msra.mxu0 0.0
    %215 = vmatprep.subr.mxu0 0.0
    %216 = vmatpush1.msra.mxu0 0.0
    %217 = vmatprep.subr.mxu0 0.0
    %218 = vmatpush1.msra.mxu0 0.0
    %219 = vmatprep.subr.mxu0 0.0
    %220 = vmatpush1.msra.mxu0 0.0
    %221 = vmatprep.mubr.f32.mxu0 0.0
    %222 = vmatmul.mubr.f32.gmra.mrb[0].mxu0 %v152
    %v223 = vpop.f32.mrb[0].mxu0
    %v224 = vadd.f32 %v146, %v223
    %v225 = vpop.f32.mrb[0].mxu0
    %226 = vmatprep.mubr.f32.mxu0 0.0
    %227 = vmatmul.mubr.f32.gmra.mrb[0].mxu0 %v155
    %v228 = vpop.f32.mrb[0].mxu0
    %v229 = vadd.f32 %v148, %v228
    %v230 = vpop.f32.mrb[0].mxu0
    %231 = vdwg.mxu0
    %v233 = vlaneseq
    %v234 = vshrl.u32 %v233, 7
    %v235 = vsub.s32 0, %v234
    %v236 = vrot.slane %v60, %v235
    %v238 = vadd.f32 %v224, %v236
    %v239 = vadd.f32 %v229, %v236
    %v240 = vmax.f32 %v238, 0.0
    %v241 = vmax.f32 %v239, 0.0
    %v242 = vld [vmem:[%s4] sm:$0xff]
    %v243 = vld [vmem:[%s4 + $0x8] sm:$0xff]
    %v244 = vld [vmem:[%s4 + $0x10] sm:$0xff]
    %v245 = vld [vmem:[%s4 + $0x18] sm:$0xff]
    %v246 = vld [vmem:[%s5] sm:$0x1]
    %vm247 = vcmask 261120
    %v249 = vsel %vm247, %v240, 0
    %v252 = vsel %vm247, %v241, 0
    %254 = vmatprep.subr.mxu0 0.0
    %255 = vmatpush1.msra.mxu0 %v242
    %256 = vmatprep.subr.mxu0 0.0
    %257 = vmatpush1.msra.mxu0 %v243
    %258 = vmatprep.subr.mxu0 0.0
    %259 = vmatpush1.msra.mxu0 %v244
    %260 = vmatprep.subr.mxu0 0.0
    %261 = vmatpush1.msra.mxu0 %v245
    %262 = vmatprep.subr.mxu0 0.0
    %263 = vmatpush1.msra.mxu0 0.0
    %264 = vmatprep.subr.mxu0 0.0
    %265 = vmatpush1.msra.mxu0 0.0
    %266 = vmatprep.subr.mxu0 0.0
    %267 = vmatpush1.msra.mxu0 0.0
    %268 = vmatprep.subr.mxu0 0.0
    %269 = vmatpush1.msra.mxu0 0.0
    %270 = vmatprep.subr.mxu0 0.0
    %271 = vmatpush1.msra.mxu0 0.0
    %272 = vmatprep.subr.mxu0 0.0
    %273 = vmatpush1.msra.mxu0 0.0
    %274 = vmatprep.subr.mxu0 0.0
    %275 = vmatpush1.msra.mxu0 0.0
    %276 = vmatprep.subr.mxu0 0.0
    %277 = vmatpush1.msra.mxu0 0.0
    %278 = vmatprep.subr.mxu0 0.0
    %279 = vmatpush1.msra.mxu0 0.0
    %280 = vmatprep.subr.mxu0 0.0
    %281 = vmatpush1.msra.mxu0 0.0
    %282 = vmatprep.subr.mxu0 0.0
    %283 = vmatpush1.msra.mxu0 0.0
    %284 = vmatprep.subr.mxu0 0.0
    %285 = vmatpush1.msra.mxu0 0.0
    %286 = vmatprep.subr.mxu0 0.0
    %287 = vmatpush1.msra.mxu0 0.0
    %288 = vmatprep.subr.mxu0 0.0
    %289 = vmatpush1.msra.mxu0 0.0
    %290 = vmatprep.subr.mxu0 0.0
    %291 = vmatpush1.msra.mxu0 0.0
    %292 = vmatprep.subr.mxu0 0.0
    %293 = vmatpush1.msra.mxu0 0.0
    %294 = vmatprep.subr.mxu0 0.0
    %295 = vmatpush1.msra.mxu0 0.0
    %296 = vmatprep.subr.mxu0 0.0
    %297 = vmatpush1.msra.mxu0 0.0
    %298 = vmatprep.subr.mxu0 0.0
    %299 = vmatpush1.msra.mxu0 0.0
    %300 = vmatprep.subr.mxu0 0.0
    %301 = vmatpush1.msra.mxu0 0.0
    %302 = vmatprep.subr.mxu0 0.0
    %303 = vmatpush1.msra.mxu0 0.0
    %304 = vmatprep.subr.mxu0 0.0
    %305 = vmatpush1.msra.mxu0 0.0
    %306 = vmatprep.subr.mxu0 0.0
    %307 = vmatpush1.msra.mxu0 0.0
    %308 = vmatprep.subr.mxu0 0.0
    %309 = vmatpush1.msra.mxu0 0.0
    %310 = vmatprep.subr.mxu0 0.0
    %311 = vmatpush1.msra.mxu0 0.0
    %312 = vmatprep.subr.mxu0 0.0
    %313 = vmatpush1.msra.mxu0 0.0
    %314 = vmatprep.subr.mxu0 0.0
    %315 = vmatpush1.msra.mxu0 0.0
    %316 = vmatprep.subr.mxu0 0.0
    %317 = vmatpush1.msra.mxu0 0.0
    %318 = vmatprep.mubr.f32.mxu0 0.0
    %319 = vmatmul.mubr.f32.gmra.mrb[0].mxu0 %v249
    %v320 = vpop.f32.mrb[0].mxu0
    %v321 = vadd.f32 0.0, %v320
    %v322 = vpop.f32.mrb[0].mxu0
    %323 = vmatprep.mubr.f32.mxu0 0.0
    %324 = vmatmul.mubr.f32.gmra.mrb[0].mxu0 %v252
    %v325 = vpop.f32.mrb[0].mxu0
    %v326 = vadd.f32 0.0, %v325
    %v327 = vpop.f32.mrb[0].mxu0
    %328 = vdwg.mxu0
    %331 = vrot.lane.b32.xlu0 %v321, 96
    %v332 = vpop.permute.xlu0 %331
    %333 = vrot.lane.b32.xlu0 %v326, 96
    %v334 = vpop.permute.xlu0 %333
    %337 = vmatprep.subr.mxu0 0.0
    %338 = vmatpush1.msra.mxu0 %v321
    %339 = vmatprep.subr.mxu0 0.0
    %340 = vmatpush1.msra.mxu0 %v326
    %341 = vmatprep.subr.mxu0 0.0
    %342 = vmatpush1.msra.mxu0 0.0
    %343 = vmatprep.subr.mxu0 0.0
    %344 = vmatpush1.msra.mxu0 0.0
    %345 = vmatprep.subr.mxu0 0.0
    %346 = vmatpush1.msra.mxu0 0.0
    %347 = vmatprep.subr.mxu0 0.0
    %348 = vmatpush1.msra.mxu0 0.0
    %349 = vmatprep.subr.mxu0 0.0
    %350 = vmatpush1.msra.mxu0 0.0
    %351 = vmatprep.subr.mxu0 0.0
    %352 = vmatpush1.msra.mxu0 0.0
    %353 = vmatprep.subr.mxu0 0.0
    %354 = vmatpush1.msra.mxu0 0.0
    %355 = vmatprep.subr.mxu0 0.0
    %356 = vmatpush1.msra.mxu0 0.0
    %357 = vmatprep.subr.mxu0 0.0
    %358 = vmatpush1.msra.mxu0 0.0
    %359 = vmatprep.subr.mxu0 0.0
    %360 = vmatpush1.msra.mxu0 0.0
    %361 = vmatprep.subr.mxu0 0.0
    %362 = vmatpush1.msra.mxu0 0.0
    %363 = vmatprep.subr.mxu0 0.0
    %364 = vmatpush1.msra.mxu0 0.0
    %365 = vmatprep.subr.mxu0 0.0
    %366 = vmatpush1.msra.mxu0 0.0
    %367 = vmatprep.subr.mxu0 0.0
    %368 = vmatpush1.msra.mxu0 0.0
    %369 = vmatprep.subr.mxu0 0.0
    %370 = vmatpush1.msra.mxu0 0.0
    %371 = vmatprep.subr.mxu0 0.0
    %372 = vmatpush1.msra.mxu0 0.0
    %373 = vmatprep.subr.mxu0 0.0
    %374 = vmatpush1.msra.mxu0 0.0
    %375 = vmatprep.subr.mxu0 0.0
    %376 = vmatpush1.msra.mxu0 0.0
    %377 = vmatprep.subr.mxu0 0.0
    %378 = vmatpush1.msra.mxu0 0.0
    %379 = vmatprep.subr.mxu0 0.0
    %380 = vmatpush1.msra.mxu0 0.0
    %381 = vmatprep.subr.mxu0 0.0
    %382 = vmatpush1.msra.mxu0 0.0
    %383 = vmatprep.subr.mxu0 0.0
    %384 = vmatpush1.msra.mxu0 0.0
    %385 = vmatprep.subr.mxu0 0.0
    %386 = vmatpush1.msra.mxu0 0.0
    %387 = vmatprep.subr.mxu0 0.0
    %388 = vmatpush1.msra.mxu0 0.0
    %389 = vmatprep.subr.mxu0 0.0
    %390 = vmatpush1.msra.mxu0 0.0
    %391 = vmatprep.subr.mxu0 0.0
    %392 = vmatpush1.msra.mxu0 0.0
    %393 = vmatprep.subr.mxu0 0.0
    %394 = vmatpush1.msra.mxu0 0.0
    %395 = vmatprep.subr.mxu0 0.0
    %396 = vmatpush1.msra.mxu0 0.0
    %397 = vmatprep.subr.mxu0 0.0
    %398 = vmatpush1.msra.mxu0 0.0
    %399 = vmatprep.subr.mxu0 0.0
    %400 = vmatpush1.msra.mxu0 0.0
    %401 = vmatprep.mubr.f32.mxu0 0.0
    %402 = vmatmul.mubr.f32.gmra.mrb[0].mxu0 %v152
    %v403 = vpop.f32.mrb[0].mxu0
    %v404 = vadd.f32 %v332, %v403
    %v405 = vpop.f32.mrb[0].mxu0
    %406 = vmatprep.mubr.f32.mxu0 0.0
    %407 = vmatmul.mubr.f32.gmra.mrb[0].mxu0 %v155
    %v408 = vpop.f32.mrb[0].mxu0
    %v409 = vadd.f32 %v334, %v408
    %v410 = vpop.f32.mrb[0].mxu0
    %411 = vdwg.mxu0
    %v413 = vlaneseq
    %v414 = vshrl.u32 %v413, 7
    %v415 = vsub.s32 0, %v414
    %v416 = vrot.slane %v246, %v415
    %v418 = vadd.f32 %v404, %v416
    %v419 = vadd.f32 %v409, %v416
    %v420 = vmax.f32 %v418, 0.0
    %v421 = vmax.f32 %v419, 0.0
    %v422 = vld [vmem:[%s6] sm:$0xff]
    %v423 = vld [vmem:[%s6 + $0x8] sm:$0xff]
    %v424 = vld [vmem:[%s6 + $0x10] sm:$0xff]
    %v425 = vld [vmem:[%s6 + $0x18] sm:$0xff]
    %v426 = vld [vmem:[%s7] sm:$0x1]
    %v428 = vsel %vm247, %v420, 0
    %v431 = vsel %vm247, %v421, 0
    %433 = vmatprep.subr.mxu0 0.0
    %434 = vmatpush1.msra.mxu0 %v422
    %435 = vmatprep.subr.mxu0 0.0
    %436 = vmatpush1.msra.mxu0 %v423
    %437 = vmatprep.subr.mxu0 0.0
    %438 = vmatpush1.msra.mxu0 %v424
    %439 = vmatprep.subr.mxu0 0.0
    %440 = vmatpush1.msra.mxu0 %v425
    %441 = vmatprep.subr.mxu0 0.0
    %442 = vmatpush1.msra.mxu0 0.0
    %443 = vmatprep.subr.mxu0 0.0
    %444 = vmatpush1.msra.mxu0 0.0
    %445 = vmatprep.subr.mxu0 0.0
    %446 = vmatpush1.msra.mxu0 0.0
    %447 = vmatprep.subr.mxu0 0.0
    %448 = vmatpush1.msra.mxu0 0.0
    %449 = vmatprep.subr.mxu0 0.0
    %450 = vmatpush1.msra.mxu0 0.0
    %451 = vmatprep.subr.mxu0 0.0
    %452 = vmatpush1.msra.mxu0 0.0
    %453 = vmatprep.subr.mxu0 0.0
    %454 = vmatpush1.msra.mxu0 0.0
    %455 = vmatprep.subr.mxu0 0.0
    %456 = vmatpush1.msra.mxu0 0.0
    %457 = vmatprep.subr.mxu0 0.0
    %458 = vmatpush1.msra.mxu0 0.0
    %459 = vmatprep.subr.mxu0 0.0
    %460 = vmatpush1.msra.mxu0 0.0
    %461 = vmatprep.subr.mxu0 0.0
    %462 = vmatpush1.msra.mxu0 0.0
    %463 = vmatprep.subr.mxu0 0.0
    %464 = vmatpush1.msra.mxu0 0.0
    %465 = vmatprep.subr.mxu0 0.0
    %466 = vmatpush1.msra.mxu0 0.0
    %467 = vmatprep.subr.mxu0 0.0
    %468 = vmatpush1.msra.mxu0 0.0
    %469 = vmatprep.subr.mxu0 0.0
    %470 = vmatpush1.msra.mxu0 0.0
    %471 = vmatprep.subr.mxu0 0.0
    %472 = vmatpush1.msra.mxu0 0.0
    %473 = vmatprep.subr.mxu0 0.0
    %474 = vmatpush1.msra.mxu0 0.0
    %475 = vmatprep.subr.mxu0 0.0
    %476 = vmatpush1.msra.mxu0 0.0
    %477 = vmatprep.subr.mxu0 0.0
    %478 = vmatpush1.msra.mxu0 0.0
    %479 = vmatprep.subr.mxu0 0.0
    %480 = vmatpush1.msra.mxu0 0.0
    %481 = vmatprep.subr.mxu0 0.0
    %482 = vmatpush1.msra.mxu0 0.0
    %483 = vmatprep.subr.mxu0 0.0
    %484 = vmatpush1.msra.mxu0 0.0
    %485 = vmatprep.subr.mxu0 0.0
    %486 = vmatpush1.msra.mxu0 0.0
    %487 = vmatprep.subr.mxu0 0.0
    %488 = vmatpush1.msra.mxu0 0.0
    %489 = vmatprep.subr.mxu0 0.0
    %490 = vmatpush1.msra.mxu0 0.0
    %491 = vmatprep.subr.mxu0 0.0
    %492 = vmatpush1.msra.mxu0 0.0
    %493 = vmatprep.subr.mxu0 0.0
    %494 = vmatpush1.msra.mxu0 0.0
    %495 = vmatprep.subr.mxu0 0.0
    %496 = vmatpush1.msra.mxu0 0.0
    %497 = vmatprep.mubr.f32.mxu0 0.0
    %498 = vmatmul.mubr.f32.gmra.mrb[0].mxu0 %v428
    %v499 = vpop.f32.mrb[0].mxu0
    %v500 = vadd.f32 0.0, %v499
    %v501 = vpop.f32.mrb[0].mxu0
    %502 = vmatprep.mubr.f32.mxu0 0.0
    %503 = vmatmul.mubr.f32.gmra.mrb[0].mxu0 %v431
    %v504 = vpop.f32.mrb[0].mxu0
    %v505 = vadd.f32 0.0, %v504
    %v506 = vpop.f32.mrb[0].mxu0
    %507 = vdwg.mxu0
    %510 = vrot.lane.b32.xlu0 %v500, 96
    %v511 = vpop.permute.xlu0 %510
    %512 = vrot.lane.b32.xlu0 %v505, 96
    %v513 = vpop.permute.xlu0 %512
    %516 = vmatprep.subr.mxu0 0.0
    %517 = vmatpush1.msra.mxu0 %v500
    %518 = vmatprep.subr.mxu0 0.0
    %519 = vmatpush1.msra.mxu0 %v505
    %520 = vmatprep.subr.mxu0 0.0
    %521 = vmatpush1.msra.mxu0 0.0
    %522 = vmatprep.subr.mxu0 0.0
    %523 = vmatpush1.msra.mxu0 0.0
    %524 = vmatprep.subr.mxu0 0.0
    %525 = vmatpush1.msra.mxu0 0.0
    %526 = vmatprep.subr.mxu0 0.0
    %527 = vmatpush1.msra.mxu0 0.0
    %528 = vmatprep.subr.mxu0 0.0
    %529 = vmatpush1.msra.mxu0 0.0
    %530 = vmatprep.subr.mxu0 0.0
    %531 = vmatpush1.msra.mxu0 0.0
    %532 = vmatprep.subr.mxu0 0.0
    %533 = vmatpush1.msra.mxu0 0.0
    %534 = vmatprep.subr.mxu0 0.0
    %535 = vmatpush1.msra.mxu0 0.0
    %536 = vmatprep.subr.mxu0 0.0
    %537 = vmatpush1.msra.mxu0 0.0
    %538 = vmatprep.subr.mxu0 0.0
    %539 = vmatpush1.msra.mxu0 0.0
    %540 = vmatprep.subr.mxu0 0.0
    %541 = vmatpush1.msra.mxu0 0.0
    %542 = vmatprep.subr.mxu0 0.0
    %543 = vmatpush1.msra.mxu0 0.0
    %544 = vmatprep.subr.mxu0 0.0
    %545 = vmatpush1.msra.mxu0 0.0
    %546 = vmatprep.subr.mxu0 0.0
    %547 = vmatpush1.msra.mxu0 0.0
    %548 = vmatprep.subr.mxu0 0.0
    %549 = vmatpush1.msra.mxu0 0.0
    %550 = vmatprep.subr.mxu0 0.0
    %551 = vmatpush1.msra.mxu0 0.0
    %552 = vmatprep.subr.mxu0 0.0
    %553 = vmatpush1.msra.mxu0 0.0
    %554 = vmatprep.subr.mxu0 0.0
    %555 = vmatpush1.msra.mxu0 0.0
    %556 = vmatprep.subr.mxu0 0.0
    %557 = vmatpush1.msra.mxu0 0.0
    %558 = vmatprep.subr.mxu0 0.0
    %559 = vmatpush1.msra.mxu0 0.0
    %560 = vmatprep.subr.mxu0 0.0
    %561 = vmatpush1.msra.mxu0 0.0
    %562 = vmatprep.subr.mxu0 0.0
    %563 = vmatpush1.msra.mxu0 0.0
    %564 = vmatprep.subr.mxu0 0.0
    %565 = vmatpush1.msra.mxu0 0.0
    %566 = vmatprep.subr.mxu0 0.0
    %567 = vmatpush1.msra.mxu0 0.0
    %568 = vmatprep.subr.mxu0 0.0
    %569 = vmatpush1.msra.mxu0 0.0
    %570 = vmatprep.subr.mxu0 0.0
    %571 = vmatpush1.msra.mxu0 0.0
    %572 = vmatprep.subr.mxu0 0.0
    %573 = vmatpush1.msra.mxu0 0.0
    %574 = vmatprep.subr.mxu0 0.0
    %575 = vmatpush1.msra.mxu0 0.0
    %576 = vmatprep.subr.mxu0 0.0
    %577 = vmatpush1.msra.mxu0 0.0
    %578 = vmatprep.subr.mxu0 0.0
    %579 = vmatpush1.msra.mxu0 0.0
    %580 = vmatprep.mubr.f32.mxu0 0.0
    %581 = vmatmul.mubr.f32.gmra.mrb[0].mxu0 %v152
    %v582 = vpop.f32.mrb[0].mxu0
    %v583 = vadd.f32 %v511, %v582
    %v584 = vpop.f32.mrb[0].mxu0
    %585 = vmatprep.mubr.f32.mxu0 0.0
    %586 = vmatmul.mubr.f32.gmra.mrb[0].mxu0 %v155
    %v587 = vpop.f32.mrb[0].mxu0
    %v588 = vadd.f32 %v513, %v587
    %v589 = vpop.f32.mrb[0].mxu0
    %590 = vdwg.mxu0
    %v592 = vlaneseq
    %v593 = vshrl.u32 %v592, 7
    %v594 = vsub.s32 0, %v593
    %v595 = vrot.slane %v426, %v594
    %v597 = vadd.f32 %v583, %v595
    %v598 = vadd.f32 %v588, %v595
    %v599 = vmax.f32 %v597, 0.0
    %v600 = vmax.f32 %v598, 0.0
    %v601 = vld [vmem:[%s8] sm:$0xff]
    %v602 = vld [vmem:[%s8 + $0x8] sm:$0xff]
    %v603 = vld [vmem:[%s8 + $0x10] sm:$0xff]
    %v604 = vld [vmem:[%s8 + $0x18] sm:$0xff]
    %v605 = vld [vmem:[%s9] sm:$0x1]
    %v607 = vsel %vm247, %v599, 0
    %v610 = vsel %vm247, %v600, 0
    %612 = vmatprep.subr.mxu0 0.0
    %613 = vmatpush1.msra.mxu0 %v601
    %614 = vmatprep.subr.mxu0 0.0
    %615 = vmatpush1.msra.mxu0 %v602
    %616 = vmatprep.subr.mxu0 0.0
    %617 = vmatpush1.msra.mxu0 %v603
    %618 = vmatprep.subr.mxu0 0.0
    %619 = vmatpush1.msra.mxu0 %v604
    %620 = vmatprep.subr.mxu0 0.0
    %621 = vmatpush1.msra.mxu0 0.0
    %622 = vmatprep.subr.mxu0 0.0
    %623 = vmatpush1.msra.mxu0 0.0
    %624 = vmatprep.subr.mxu0 0.0
    %625 = vmatpush1.msra.mxu0 0.0
    %626 = vmatprep.subr.mxu0 0.0
    %627 = vmatpush1.msra.mxu0 0.0
    %628 = vmatprep.subr.mxu0 0.0
    %629 = vmatpush1.msra.mxu0 0.0
    %630 = vmatprep.subr.mxu0 0.0
    %631 = vmatpush1.msra.mxu0 0.0
    %632 = vmatprep.subr.mxu0 0.0
    %633 = vmatpush1.msra.mxu0 0.0
    %634 = vmatprep.subr.mxu0 0.0
    %635 = vmatpush1.msra.mxu0 0.0
    %636 = vmatprep.subr.mxu0 0.0
    %637 = vmatpush1.msra.mxu0 0.0
    %638 = vmatprep.subr.mxu0 0.0
    %639 = vmatpush1.msra.mxu0 0.0
    %640 = vmatprep.subr.mxu0 0.0
    %641 = vmatpush1.msra.mxu0 0.0
    %642 = vmatprep.subr.mxu0 0.0
    %643 = vmatpush1.msra.mxu0 0.0
    %644 = vmatprep.subr.mxu0 0.0
    %645 = vmatpush1.msra.mxu0 0.0
    %646 = vmatprep.subr.mxu0 0.0
    %647 = vmatpush1.msra.mxu0 0.0
    %648 = vmatprep.subr.mxu0 0.0
    %649 = vmatpush1.msra.mxu0 0.0
    %650 = vmatprep.subr.mxu0 0.0
    %651 = vmatpush1.msra.mxu0 0.0
    %652 = vmatprep.subr.mxu0 0.0
    %653 = vmatpush1.msra.mxu0 0.0
    %654 = vmatprep.subr.mxu0 0.0
    %655 = vmatpush1.msra.mxu0 0.0
    %656 = vmatprep.subr.mxu0 0.0
    %657 = vmatpush1.msra.mxu0 0.0
    %658 = vmatprep.subr.mxu0 0.0
    %659 = vmatpush1.msra.mxu0 0.0
    %660 = vmatprep.subr.mxu0 0.0
    %661 = vmatpush1.msra.mxu0 0.0
    %662 = vmatprep.subr.mxu0 0.0
    %663 = vmatpush1.msra.mxu0 0.0
    %664 = vmatprep.subr.mxu0 0.0
    %665 = vmatpush1.msra.mxu0 0.0
    %666 = vmatprep.subr.mxu0 0.0
    %667 = vmatpush1.msra.mxu0 0.0
    %668 = vmatprep.subr.mxu0 0.0
    %669 = vmatpush1.msra.mxu0 0.0
    %670 = vmatprep.subr.mxu0 0.0
    %671 = vmatpush1.msra.mxu0 0.0
    %672 = vmatprep.subr.mxu0 0.0
    %673 = vmatpush1.msra.mxu0 0.0
    %674 = vmatprep.subr.mxu0 0.0
    %675 = vmatpush1.msra.mxu0 0.0
    %676 = vmatprep.mubr.f32.mxu0 0.0
    %677 = vmatmul.mubr.f32.gmra.mrb[0].mxu0 %v607
    %v678 = vpop.f32.mrb[0].mxu0
    %v679 = vadd.f32 0.0, %v678
    %v680 = vpop.f32.mrb[0].mxu0
    %681 = vmatprep.mubr.f32.mxu0 0.0
    %682 = vmatmul.mubr.f32.gmra.mrb[0].mxu0 %v610
    %v683 = vpop.f32.mrb[0].mxu0
    %v684 = vadd.f32 0.0, %v683
    %v685 = vpop.f32.mrb[0].mxu0
    %686 = vdwg.mxu0
    %689 = vrot.lane.b32.xlu0 %v679, 96
    %v690 = vpop.permute.xlu0 %689
    %691 = vrot.lane.b32.xlu0 %v684, 96
    %v692 = vpop.permute.xlu0 %691
    %695 = vmatprep.subr.mxu0 0.0
    %696 = vmatpush1.msra.mxu0 %v679
    %697 = vmatprep.subr.mxu0 0.0
    %698 = vmatpush1.msra.mxu0 %v684
    %699 = vmatprep.subr.mxu0 0.0
    %700 = vmatpush1.msra.mxu0 0.0
    %701 = vmatprep.subr.mxu0 0.0
    %702 = vmatpush1.msra.mxu0 0.0
    %703 = vmatprep.subr.mxu0 0.0
    %704 = vmatpush1.msra.mxu0 0.0
    %705 = vmatprep.subr.mxu0 0.0
    %706 = vmatpush1.msra.mxu0 0.0
    %707 = vmatprep.subr.mxu0 0.0
    %708 = vmatpush1.msra.mxu0 0.0
    %709 = vmatprep.subr.mxu0 0.0
    %710 = vmatpush1.msra.mxu0 0.0
    %711 = vmatprep.subr.mxu0 0.0
    %712 = vmatpush1.msra.mxu0 0.0
    %713 = vmatprep.subr.mxu0 0.0
    %714 = vmatpush1.msra.mxu0 0.0
    %715 = vmatprep.subr.mxu0 0.0
    %716 = vmatpush1.msra.mxu0 0.0
    %717 = vmatprep.subr.mxu0 0.0
    %718 = vmatpush1.msra.mxu0 0.0
    %719 = vmatprep.subr.mxu0 0.0
    %720 = vmatpush1.msra.mxu0 0.0
    %721 = vmatprep.subr.mxu0 0.0
    %722 = vmatpush1.msra.mxu0 0.0
    %723 = vmatprep.subr.mxu0 0.0
    %724 = vmatpush1.msra.mxu0 0.0
    %725 = vmatprep.subr.mxu0 0.0
    %726 = vmatpush1.msra.mxu0 0.0
    %727 = vmatprep.subr.mxu0 0.0
    %728 = vmatpush1.msra.mxu0 0.0
    %729 = vmatprep.subr.mxu0 0.0
    %730 = vmatpush1.msra.mxu0 0.0
    %731 = vmatprep.subr.mxu0 0.0
    %732 = vmatpush1.msra.mxu0 0.0
    %733 = vmatprep.subr.mxu0 0.0
    %734 = vmatpush1.msra.mxu0 0.0
    %735 = vmatprep.subr.mxu0 0.0
    %736 = vmatpush1.msra.mxu0 0.0
    %737 = vmatprep.subr.mxu0 0.0
    %738 = vmatpush1.msra.mxu0 0.0
    %739 = vmatprep.subr.mxu0 0.0
    %740 = vmatpush1.msra.mxu0 0.0
    %741 = vmatprep.subr.mxu0 0.0
    %742 = vmatpush1.msra.mxu0 0.0
    %743 = vmatprep.subr.mxu0 0.0
    %744 = vmatpush1.msra.mxu0 0.0
    %745 = vmatprep.subr.mxu0 0.0
    %746 = vmatpush1.msra.mxu0 0.0
    %747 = vmatprep.subr.mxu0 0.0
    %748 = vmatpush1.msra.mxu0 0.0
    %749 = vmatprep.subr.mxu0 0.0
    %750 = vmatpush1.msra.mxu0 0.0
    %751 = vmatprep.subr.mxu0 0.0
    %752 = vmatpush1.msra.mxu0 0.0
    %753 = vmatprep.subr.mxu0 0.0
    %754 = vmatpush1.msra.mxu0 0.0
    %755 = vmatprep.subr.mxu0 0.0
    %756 = vmatpush1.msra.mxu0 0.0
    %757 = vmatprep.subr.mxu0 0.0
    %758 = vmatpush1.msra.mxu0 0.0
    %759 = vmatprep.mubr.f32.mxu0 0.0
    %760 = vmatmul.mubr.f32.gmra.mrb[0].mxu0 %v152
    %v761 = vpop.f32.mrb[0].mxu0
    %v762 = vadd.f32 %v690, %v761
    %v763 = vpop.f32.mrb[0].mxu0
    %764 = vmatprep.mubr.f32.mxu0 0.0
    %765 = vmatmul.mubr.f32.gmra.mrb[0].mxu0 %v155
    %v766 = vpop.f32.mrb[0].mxu0
    %v767 = vadd.f32 %v692, %v766
    %v768 = vpop.f32.mrb[0].mxu0
    %769 = vdwg.mxu0
    %v771 = vlaneseq
    %v772 = vshrl.u32 %v771, 7
    %v773 = vsub.s32 0, %v772
    %v774 = vrot.slane %v605, %v773
    %v776 = vadd.f32 %v762, %v774
    %v777 = vadd.f32 %v767, %v774
    %v778 = vmax.f32 %v776, 0.0
    %v779 = vmax.f32 %v777, 0.0
    %v780 = vld [vmem:[%s10] sm:$0xff]
    %v781 = vld [vmem:[%s10 + $0x8] sm:$0xff]
    %v782 = vld [vmem:[%s10 + $0x10] sm:$0xff]
    %v783 = vld [vmem:[%s10 + $0x18] sm:$0xff]
    %v784 = vld [vmem:[%s11] sm:$0x1]
    %v786 = vsel %vm247, %v778, 0
    %v789 = vsel %vm247, %v779, 0
    %791 = vmatprep.subr.mxu0 0.0
    %792 = vmatpush1.msra.mxu0 %v780
    %793 = vmatprep.subr.mxu0 0.0
    %794 = vmatpush1.msra.mxu0 %v781
    %795 = vmatprep.subr.mxu0 0.0
    %796 = vmatpush1.msra.mxu0 %v782
    %797 = vmatprep.subr.mxu0 0.0
    %798 = vmatpush1.msra.mxu0 %v783
    %799 = vmatprep.subr.mxu0 0.0
    %800 = vmatpush1.msra.mxu0 0.0
    %801 = vmatprep.subr.mxu0 0.0
    %802 = vmatpush1.msra.mxu0 0.0
    %803 = vmatprep.subr.mxu0 0.0
    %804 = vmatpush1.msra.mxu0 0.0
    %805 = vmatprep.subr.mxu0 0.0
    %806 = vmatpush1.msra.mxu0 0.0
    %807 = vmatprep.subr.mxu0 0.0
    %808 = vmatpush1.msra.mxu0 0.0
    %809 = vmatprep.subr.mxu0 0.0
    %810 = vmatpush1.msra.mxu0 0.0
    %811 = vmatprep.subr.mxu0 0.0
    %812 = vmatpush1.msra.mxu0 0.0
    %813 = vmatprep.subr.mxu0 0.0
    %814 = vmatpush1.msra.mxu0 0.0
    %815 = vmatprep.subr.mxu0 0.0
    %816 = vmatpush1.msra.mxu0 0.0
    %817 = vmatprep.subr.mxu0 0.0
    %818 = vmatpush1.msra.mxu0 0.0
    %819 = vmatprep.subr.mxu0 0.0
    %820 = vmatpush1.msra.mxu0 0.0
    %821 = vmatprep.subr.mxu0 0.0
    %822 = vmatpush1.msra.mxu0 0.0
    %823 = vmatprep.subr.mxu0 0.0
    %824 = vmatpush1.msra.mxu0 0.0
    %825 = vmatprep.subr.mxu0 0.0
    %826 = vmatpush1.msra.mxu0 0.0
    %827 = vmatprep.subr.mxu0 0.0
    %828 = vmatpush1.msra.mxu0 0.0
    %829 = vmatprep.subr.mxu0 0.0
    %830 = vmatpush1.msra.mxu0 0.0
    %831 = vmatprep.subr.mxu0 0.0
    %832 = vmatpush1.msra.mxu0 0.0
    %833 = vmatprep.subr.mxu0 0.0
    %834 = vmatpush1.msra.mxu0 0.0
    %835 = vmatprep.subr.mxu0 0.0
    %836 = vmatpush1.msra.mxu0 0.0
    %837 = vmatprep.subr.mxu0 0.0
    %838 = vmatpush1.msra.mxu0 0.0
    %839 = vmatprep.subr.mxu0 0.0
    %840 = vmatpush1.msra.mxu0 0.0
    %841 = vmatprep.subr.mxu0 0.0
    %842 = vmatpush1.msra.mxu0 0.0
    %843 = vmatprep.subr.mxu0 0.0
    %844 = vmatpush1.msra.mxu0 0.0
    %845 = vmatprep.subr.mxu0 0.0
    %846 = vmatpush1.msra.mxu0 0.0
    %847 = vmatprep.subr.mxu0 0.0
    %848 = vmatpush1.msra.mxu0 0.0
    %849 = vmatprep.subr.mxu0 0.0
    %850 = vmatpush1.msra.mxu0 0.0
    %851 = vmatprep.subr.mxu0 0.0
    %852 = vmatpush1.msra.mxu0 0.0
    %853 = vmatprep.subr.mxu0 0.0
    %854 = vmatpush1.msra.mxu0 0.0
    %855 = vmatprep.mubr.f32.mxu0 0.0
    %856 = vmatmul.mubr.f32.gmra.mrb[0].mxu0 %v786
    %v857 = vpop.f32.mrb[0].mxu0
    %v858 = vadd.f32 0.0, %v857
    %v859 = vpop.f32.mrb[0].mxu0
    %860 = vmatprep.mubr.f32.mxu0 0.0
    %861 = vmatmul.mubr.f32.gmra.mrb[0].mxu0 %v789
    %v862 = vpop.f32.mrb[0].mxu0
    %v863 = vadd.f32 0.0, %v862
    %v864 = vpop.f32.mrb[0].mxu0
    %865 = vdwg.mxu0
    %868 = vrot.lane.b32.xlu0 %v858, 96
    %v869 = vpop.permute.xlu0 %868
    %870 = vrot.lane.b32.xlu0 %v863, 96
    %v871 = vpop.permute.xlu0 %870
    %874 = vmatprep.subr.mxu0 0.0
    %875 = vmatpush1.msra.mxu0 %v858
    %876 = vmatprep.subr.mxu0 0.0
    %877 = vmatpush1.msra.mxu0 %v863
    %878 = vmatprep.subr.mxu0 0.0
    %879 = vmatpush1.msra.mxu0 0.0
    %880 = vmatprep.subr.mxu0 0.0
    %881 = vmatpush1.msra.mxu0 0.0
    %882 = vmatprep.subr.mxu0 0.0
    %883 = vmatpush1.msra.mxu0 0.0
    %884 = vmatprep.subr.mxu0 0.0
    %885 = vmatpush1.msra.mxu0 0.0
    %886 = vmatprep.subr.mxu0 0.0
    %887 = vmatpush1.msra.mxu0 0.0
    %888 = vmatprep.subr.mxu0 0.0
    %889 = vmatpush1.msra.mxu0 0.0
    %890 = vmatprep.subr.mxu0 0.0
    %891 = vmatpush1.msra.mxu0 0.0
    %892 = vmatprep.subr.mxu0 0.0
    %893 = vmatpush1.msra.mxu0 0.0
    %894 = vmatprep.subr.mxu0 0.0
    %895 = vmatpush1.msra.mxu0 0.0
    %896 = vmatprep.subr.mxu0 0.0
    %897 = vmatpush1.msra.mxu0 0.0
    %898 = vmatprep.subr.mxu0 0.0
    %899 = vmatpush1.msra.mxu0 0.0
    %900 = vmatprep.subr.mxu0 0.0
    %901 = vmatpush1.msra.mxu0 0.0
    %902 = vmatprep.subr.mxu0 0.0
    %903 = vmatpush1.msra.mxu0 0.0
    %904 = vmatprep.subr.mxu0 0.0
    %905 = vmatpush1.msra.mxu0 0.0
    %906 = vmatprep.subr.mxu0 0.0
    %907 = vmatpush1.msra.mxu0 0.0
    %908 = vmatprep.subr.mxu0 0.0
    %909 = vmatpush1.msra.mxu0 0.0
    %910 = vmatprep.subr.mxu0 0.0
    %911 = vmatpush1.msra.mxu0 0.0
    %912 = vmatprep.subr.mxu0 0.0
    %913 = vmatpush1.msra.mxu0 0.0
    %914 = vmatprep.subr.mxu0 0.0
    %915 = vmatpush1.msra.mxu0 0.0
    %916 = vmatprep.subr.mxu0 0.0
    %917 = vmatpush1.msra.mxu0 0.0
    %918 = vmatprep.subr.mxu0 0.0
    %919 = vmatpush1.msra.mxu0 0.0
    %920 = vmatprep.subr.mxu0 0.0
    %921 = vmatpush1.msra.mxu0 0.0
    %922 = vmatprep.subr.mxu0 0.0
    %923 = vmatpush1.msra.mxu0 0.0
    %924 = vmatprep.subr.mxu0 0.0
    %925 = vmatpush1.msra.mxu0 0.0
    %926 = vmatprep.subr.mxu0 0.0
    %927 = vmatpush1.msra.mxu0 0.0
    %928 = vmatprep.subr.mxu0 0.0
    %929 = vmatpush1.msra.mxu0 0.0
    %930 = vmatprep.subr.mxu0 0.0
    %931 = vmatpush1.msra.mxu0 0.0
    %932 = vmatprep.subr.mxu0 0.0
    %933 = vmatpush1.msra.mxu0 0.0
    %934 = vmatprep.subr.mxu0 0.0
    %935 = vmatpush1.msra.mxu0 0.0
    %936 = vmatprep.subr.mxu0 0.0
    %937 = vmatpush1.msra.mxu0 0.0
    %938 = vmatprep.mubr.f32.mxu0 0.0
    %939 = vmatmul.mubr.f32.gmra.mrb[0].mxu0 %v152
    %v940 = vpop.f32.mrb[0].mxu0
    %v941 = vadd.f32 %v869, %v940
    %v942 = vpop.f32.mrb[0].mxu0
    %943 = vmatprep.mubr.f32.mxu0 0.0
    %944 = vmatmul.mubr.f32.gmra.mrb[0].mxu0 %v155
    %v945 = vpop.f32.mrb[0].mxu0
    %v946 = vadd.f32 %v871, %v945
    %v947 = vpop.f32.mrb[0].mxu0
    %948 = vdwg.mxu0
    %v950 = vlaneseq
    %v951 = vshrl.u32 %v950, 7
    %v952 = vsub.s32 0, %v951
    %v953 = vrot.slane %v784, %v952
    %v955 = vadd.f32 %v941, %v953
    %v956 = vadd.f32 %v946, %v953
    %v957 = vmax.f32 %v955, 0.0
    %v958 = vmax.f32 %v956, 0.0
    %v959 = vld [vmem:[%s12] sm:$0xff]
    %v960 = vld [vmem:[%s12 + $0x8] sm:$0xff]
    %v961 = vld [vmem:[%s12 + $0x10] sm:$0xff]
    %v962 = vld [vmem:[%s12 + $0x18] sm:$0xff]
    %v963 = vld [vmem:[%s12 + $0x20] sm:$0xff]
    %v964 = vld [vmem:[%s12 + $0x28] sm:$0xff]
    %v965 = vld [vmem:[%s12 + $0x30] sm:$0xff]
    %v966 = vld [vmem:[%s12 + $0x38] sm:$0xff]
    %v968 = vrot.slane %v957, 2
    %v969 = vsel %vm247, %v968, 0
    %971 = vmatprep.subr.mxu0 0.0
    %972 = vmatpush1.msra.mxu0 %v963
    %973 = vmatprep.subr.mxu0 0.0
    %974 = vmatpush1.msra.mxu0 %v964
    %975 = vmatprep.subr.mxu0 0.0
    %976 = vmatpush1.msra.mxu0 %v965
    %977 = vmatprep.subr.mxu0 0.0
    %978 = vmatpush1.msra.mxu0 %v966
    %979 = vmatprep.subr.mxu0 0.0
    %980 = vmatpush1.msra.mxu0 0.0
    %981 = vmatprep.subr.mxu0 0.0
    %982 = vmatpush1.msra.mxu0 0.0
    %983 = vmatprep.subr.mxu0 0.0
    %984 = vmatpush1.msra.mxu0 0.0
    %985 = vmatprep.subr.mxu0 0.0
    %986 = vmatpush1.msra.mxu0 0.0
    %987 = vmatprep.subr.mxu0 0.0
    %988 = vmatpush1.msra.mxu0 0.0
    %989 = vmatprep.subr.mxu0 0.0
    %990 = vmatpush1.msra.mxu0 0.0
    %991 = vmatprep.subr.mxu0 0.0
    %992 = vmatpush1.msra.mxu0 0.0
    %993 = vmatprep.subr.mxu0 0.0
    %994 = vmatpush1.msra.mxu0 0.0
    %995 = vmatprep.subr.mxu0 0.0
    %996 = vmatpush1.msra.mxu0 0.0
    %997 = vmatprep.subr.mxu0 0.0
    %998 = vmatpush1.msra.mxu0 0.0
    %999 = vmatprep.subr.mxu0 0.0
    %1000 = vmatpush1.msra.mxu0 0.0
    %1001 = vmatprep.subr.mxu0 0.0
    %1002 = vmatpush1.msra.mxu0 0.0
    %1003 = vmatprep.subr.mxu0 0.0
    %1004 = vmatpush1.msra.mxu0 0.0
    %1005 = vmatprep.subr.mxu0 0.0
    %1006 = vmatpush1.msra.mxu0 0.0
    %1007 = vmatprep.subr.mxu0 0.0
    %1008 = vmatpush1.msra.mxu0 0.0
    %1009 = vmatprep.subr.mxu0 0.0
    %1010 = vmatpush1.msra.mxu0 0.0
    %1011 = vmatprep.subr.mxu0 0.0
    %1012 = vmatpush1.msra.mxu0 0.0
    %1013 = vmatprep.subr.mxu0 0.0
    %1014 = vmatpush1.msra.mxu0 0.0
    %1015 = vmatprep.subr.mxu0 0.0
    %1016 = vmatpush1.msra.mxu0 0.0
    %1017 = vmatprep.subr.mxu0 0.0
    %1018 = vmatpush1.msra.mxu0 0.0
    %1019 = vmatprep.subr.mxu0 0.0
    %1020 = vmatpush1.msra.mxu0 0.0
    %1021 = vmatprep.subr.mxu0 0.0
    %1022 = vmatpush1.msra.mxu0 0.0
    %1023 = vmatprep.subr.mxu0 0.0
    %1024 = vmatpush1.msra.mxu0 0.0
    %1025 = vmatprep.subr.mxu0 0.0
    %1026 = vmatpush1.msra.mxu0 0.0
    %1027 = vmatprep.subr.mxu0 0.0
    %1028 = vmatpush1.msra.mxu0 0.0
    %1029 = vmatprep.subr.mxu0 0.0
    %1030 = vmatpush1.msra.mxu0 0.0
    %1031 = vmatprep.subr.mxu0 0.0
    %1032 = vmatpush1.msra.mxu0 0.0
    %1033 = vmatprep.subr.mxu0 0.0
    %1034 = vmatpush1.msra.mxu0 0.0
    %1035 = vmatprep.mubr.f32.mxu0 0.0
    %1036 = vmatmul.mubr.f32.gmra.mrb[0].mxu0 %v969
    %v1037 = vpop.f32.mrb[0].mxu0
    %v1038 = vadd.f32 0.0, %v1037
    %v1039 = vpop.f32.mrb[0].mxu0
    %1040 = vdwg.mxu0
    %v1041 = vld [vmem:[%s12 + $0x40] sm:$0xff]
    %v1042 = vld [vmem:[%s12 + $0x48] sm:$0xff]
    %v1043 = vld [vmem:[%s12 + $0x50] sm:$0xff]
    %v1044 = vld [vmem:[%s12 + $0x58] sm:$0xff]
    %v1045 = vld [vmem:[%s12 + $0x60] sm:$0xff]
    %v1046 = vld [vmem:[%s12 + $0x68] sm:$0xff]
    %v1047 = vld [vmem:[%s12 + $0x70] sm:$0xff]
    %v1048 = vld [vmem:[%s12 + $0x78] sm:$0xff]
    %v1049 = vrot.slane %v957, 6
    %v1050 = vsel %vm247, %v1049, 0
    %1052 = vmatprep.subr.mxu0 0.0
    %1053 = vmatpush1.msra.mxu0 %v1045
    %1054 = vmatprep.subr.mxu0 0.0
    %1055 = vmatpush1.msra.mxu0 %v1046
    %1056 = vmatprep.subr.mxu0 0.0
    %1057 = vmatpush1.msra.mxu0 %v1047
    %1058 = vmatprep.subr.mxu0 0.0
    %1059 = vmatpush1.msra.mxu0 %v1048
    %1060 = vmatprep.subr.mxu0 0.0
    %1061 = vmatpush1.msra.mxu0 0.0
    %1062 = vmatprep.subr.mxu0 0.0
    %1063 = vmatpush1.msra.mxu0 0.0
    %1064 = vmatprep.subr.mxu0 0.0
    %1065 = vmatpush1.msra.mxu0 0.0
    %1066 = vmatprep.subr.mxu0 0.0
    %1067 = vmatpush1.msra.mxu0 0.0
    %1068 = vmatprep.subr.mxu0 0.0
    %1069 = vmatpush1.msra.mxu0 0.0
    %1070 = vmatprep.subr.mxu0 0.0
    %1071 = vmatpush1.msra.mxu0 0.0
    %1072 = vmatprep.subr.mxu0 0.0
    %1073 = vmatpush1.msra.mxu0 0.0
    %1074 = vmatprep.subr.mxu0 0.0
    %1075 = vmatpush1.msra.mxu0 0.0
    %1076 = vmatprep.subr.mxu0 0.0
    %1077 = vmatpush1.msra.mxu0 0.0
    %1078 = vmatprep.subr.mxu0 0.0
    %1079 = vmatpush1.msra.mxu0 0.0
    %1080 = vmatprep.subr.mxu0 0.0
    %1081 = vmatpush1.msra.mxu0 0.0
    %1082 = vmatprep.subr.mxu0 0.0
    %1083 = vmatpush1.msra.mxu0 0.0
    %1084 = vmatprep.subr.mxu0 0.0
    %1085 = vmatpush1.msra.mxu0 0.0
    %1086 = vmatprep.subr.mxu0 0.0
    %1087 = vmatpush1.msra.mxu0 0.0
    %1088 = vmatprep.subr.mxu0 0.0
    %1089 = vmatpush1.msra.mxu0 0.0
    %1090 = vmatprep.subr.mxu0 0.0
    %1091 = vmatpush1.msra.mxu0 0.0
    %1092 = vmatprep.subr.mxu0 0.0
    %1093 = vmatpush1.msra.mxu0 0.0
    %1094 = vmatprep.subr.mxu0 0.0
    %1095 = vmatpush1.msra.mxu0 0.0
    %1096 = vmatprep.subr.mxu0 0.0
    %1097 = vmatpush1.msra.mxu0 0.0
    %1098 = vmatprep.subr.mxu0 0.0
    %1099 = vmatpush1.msra.mxu0 0.0
    %1100 = vmatprep.subr.mxu0 0.0
    %1101 = vmatpush1.msra.mxu0 0.0
    %1102 = vmatprep.subr.mxu0 0.0
    %1103 = vmatpush1.msra.mxu0 0.0
    %1104 = vmatprep.subr.mxu0 0.0
    %1105 = vmatpush1.msra.mxu0 0.0
    %1106 = vmatprep.subr.mxu0 0.0
    %1107 = vmatpush1.msra.mxu0 0.0
    %1108 = vmatprep.subr.mxu0 0.0
    %1109 = vmatpush1.msra.mxu0 0.0
    %1110 = vmatprep.subr.mxu0 0.0
    %1111 = vmatpush1.msra.mxu0 0.0
    %1112 = vmatprep.subr.mxu0 0.0
    %1113 = vmatpush1.msra.mxu0 0.0
    %1114 = vmatprep.subr.mxu0 0.0
    %1115 = vmatpush1.msra.mxu0 0.0
    %1116 = vmatprep.mubr.f32.mxu0 0.0
    %1117 = vmatmul.mubr.f32.gmra.mrb[0].mxu0 %v1050
    %v1118 = vpop.f32.mrb[0].mxu0
    %v1119 = vadd.f32 0.0, %v1118
    %v1120 = vpop.f32.mrb[0].mxu0
    %1121 = vdwg.mxu0
    %v1122 = vld [vmem:[%s12 + $0x80] sm:$0xff]
    %v1123 = vld [vmem:[%s12 + $0x88] sm:$0xff]
    %v1124 = vld [vmem:[%s12 + $0x90] sm:$0xff]
    %v1125 = vld [vmem:[%s12 + $0x98] sm:$0xff]
    %v1126 = vld [vmem:[%s12 + $0xa0] sm:$0xff]
    %v1127 = vld [vmem:[%s12 + $0xa8] sm:$0xff]
    %v1128 = vld [vmem:[%s12 + $0xb0] sm:$0xff]
    %v1129 = vld [vmem:[%s12 + $0xb8] sm:$0xff]
    %v1131 = vrot.slane %v958, 2
    %v1132 = vsel %vm247, %v1131, 0
    %1134 = vmatprep.subr.mxu0 0.0
    %1135 = vmatpush1.msra.mxu0 %v1126
    %1136 = vmatprep.subr.mxu0 0.0
    %1137 = vmatpush1.msra.mxu0 %v1127
    %1138 = vmatprep.subr.mxu0 0.0
    %1139 = vmatpush1.msra.mxu0 %v1128
    %1140 = vmatprep.subr.mxu0 0.0
    %1141 = vmatpush1.msra.mxu0 %v1129
    %1142 = vmatprep.subr.mxu0 0.0
    %1143 = vmatpush1.msra.mxu0 0.0
    %1144 = vmatprep.subr.mxu0 0.0
    %1145 = vmatpush1.msra.mxu0 0.0
    %1146 = vmatprep.subr.mxu0 0.0
    %1147 = vmatpush1.msra.mxu0 0.0
    %1148 = vmatprep.subr.mxu0 0.0
    %1149 = vmatpush1.msra.mxu0 0.0
    %1150 = vmatprep.subr.mxu0 0.0
    %1151 = vmatpush1.msra.mxu0 0.0
    %1152 = vmatprep.subr.mxu0 0.0
    %1153 = vmatpush1.msra.mxu0 0.0
    %1154 = vmatprep.subr.mxu0 0.0
    %1155 = vmatpush1.msra.mxu0 0.0
    %1156 = vmatprep.subr.mxu0 0.0
    %1157 = vmatpush1.msra.mxu0 0.0
    %1158 = vmatprep.subr.mxu0 0.0
    %1159 = vmatpush1.msra.mxu0 0.0
    %1160 = vmatprep.subr.mxu0 0.0
    %1161 = vmatpush1.msra.mxu0 0.0
    %1162 = vmatprep.subr.mxu0 0.0
    %1163 = vmatpush1.msra.mxu0 0.0
    %1164 = vmatprep.subr.mxu0 0.0
    %1165 = vmatpush1.msra.mxu0 0.0
    %1166 = vmatprep.subr.mxu0 0.0
    %1167 = vmatpush1.msra.mxu0 0.0
    %1168 = vmatprep.subr.mxu0 0.0
    %1169 = vmatpush1.msra.mxu0 0.0
    %1170 = vmatprep.subr.mxu0 0.0
    %1171 = vmatpush1.msra.mxu0 0.0
    %1172 = vmatprep.subr.mxu0 0.0
    %1173 = vmatpush1.msra.mxu0 0.0
    %1174 = vmatprep.subr.mxu0 0.0
    %1175 = vmatpush1.msra.mxu0 0.0
    %1176 = vmatprep.subr.mxu0 0.0
    %1177 = vmatpush1.msra.mxu0 0.0
    %1178 = vmatprep.subr.mxu0 0.0
    %1179 = vmatpush1.msra.mxu0 0.0
    %1180 = vmatprep.subr.mxu0 0.0
    %1181 = vmatpush1.msra.mxu0 0.0
    %1182 = vmatprep.subr.mxu0 0.0
    %1183 = vmatpush1.msra.mxu0 0.0
    %1184 = vmatprep.subr.mxu0 0.0
    %1185 = vmatpush1.msra.mxu0 0.0
    %1186 = vmatprep.subr.mxu0 0.0
    %1187 = vmatpush1.msra.mxu0 0.0
    %1188 = vmatprep.subr.mxu0 0.0
    %1189 = vmatpush1.msra.mxu0 0.0
    %1190 = vmatprep.subr.mxu0 0.0
    %1191 = vmatpush1.msra.mxu0 0.0
    %1192 = vmatprep.subr.mxu0 0.0
    %1193 = vmatpush1.msra.mxu0 0.0
    %1194 = vmatprep.subr.mxu0 0.0
    %1195 = vmatpush1.msra.mxu0 0.0
    %1196 = vmatprep.subr.mxu0 0.0
    %1197 = vmatpush1.msra.mxu0 0.0
    %1198 = vmatprep.mubr.f32.mxu0 0.0
    %1199 = vmatmul.mubr.f32.gmra.mrb[0].mxu0 %v1132
    %v1200 = vpop.f32.mrb[0].mxu0
    %v1201 = vadd.f32 0.0, %v1200
    %v1202 = vpop.f32.mrb[0].mxu0
    %1203 = vdwg.mxu0
    %v1204 = vld [vmem:[%s12 + $0xc0] sm:$0xff]
    %v1205 = vld [vmem:[%s12 + $0xc8] sm:$0xff]
    %v1206 = vld [vmem:[%s12 + $0xd0] sm:$0xff]
    %v1207 = vld [vmem:[%s12 + $0xd8] sm:$0xff]
    %v1208 = vld [vmem:[%s12 + $0xe0] sm:$0xff]
    %v1209 = vld [vmem:[%s12 + $0xe8] sm:$0xff]
    %v1210 = vld [vmem:[%s12 + $0xf0] sm:$0xff]
    %v1211 = vld [vmem:[%s12 + $0xf8] sm:$0xff]
    %v1212 = vrot.slane %v958, 6
    %v1213 = vsel %vm247, %v1212, 0
    %1215 = vmatprep.subr.mxu0 0.0
    %1216 = vmatpush1.msra.mxu0 %v1208
    %1217 = vmatprep.subr.mxu0 0.0
    %1218 = vmatpush1.msra.mxu0 %v1209
    %1219 = vmatprep.subr.mxu0 0.0
    %1220 = vmatpush1.msra.mxu0 %v1210
    %1221 = vmatprep.subr.mxu0 0.0
    %1222 = vmatpush1.msra.mxu0 %v1211
    %1223 = vmatprep.subr.mxu0 0.0
    %1224 = vmatpush1.msra.mxu0 0.0
    %1225 = vmatprep.subr.mxu0 0.0
    %1226 = vmatpush1.msra.mxu0 0.0
    %1227 = vmatprep.subr.mxu0 0.0
    %1228 = vmatpush1.msra.mxu0 0.0
    %1229 = vmatprep.subr.mxu0 0.0
    %1230 = vmatpush1.msra.mxu0 0.0
    %1231 = vmatprep.subr.mxu0 0.0
    %1232 = vmatpush1.msra.mxu0 0.0
    %1233 = vmatprep.subr.mxu0 0.0
    %1234 = vmatpush1.msra.mxu0 0.0
    %1235 = vmatprep.subr.mxu0 0.0
    %1236 = vmatpush1.msra.mxu0 0.0
    %1237 = vmatprep.subr.mxu0 0.0
    %1238 = vmatpush1.msra.mxu0 0.0
    %1239 = vmatprep.subr.mxu0 0.0
    %1240 = vmatpush1.msra.mxu0 0.0
    %1241 = vmatprep.subr.mxu0 0.0
    %1242 = vmatpush1.msra.mxu0 0.0
    %1243 = vmatprep.subr.mxu0 0.0
    %1244 = vmatpush1.msra.mxu0 0.0
    %1245 = vmatprep.subr.mxu0 0.0
    %1246 = vmatpush1.msra.mxu0 0.0
    %1247 = vmatprep.subr.mxu0 0.0
    %1248 = vmatpush1.msra.mxu0 0.0
    %1249 = vmatprep.subr.mxu0 0.0
    %1250 = vmatpush1.msra.mxu0 0.0
    %1251 = vmatprep.subr.mxu0 0.0
    %1252 = vmatpush1.msra.mxu0 0.0
    %1253 = vmatprep.subr.mxu0 0.0
    %1254 = vmatpush1.msra.mxu0 0.0
    %1255 = vmatprep.subr.mxu0 0.0
    %1256 = vmatpush1.msra.mxu0 0.0
    %1257 = vmatprep.subr.mxu0 0.0
    %1258 = vmatpush1.msra.mxu0 0.0
    %1259 = vmatprep.subr.mxu0 0.0
    %1260 = vmatpush1.msra.mxu0 0.0
    %1261 = vmatprep.subr.mxu0 0.0
    %1262 = vmatpush1.msra.mxu0 0.0
    %1263 = vmatprep.subr.mxu0 0.0
    %1264 = vmatpush1.msra.mxu0 0.0
    %1265 = vmatprep.subr.mxu0 0.0
    %1266 = vmatpush1.msra.mxu0 0.0
    %1267 = vmatprep.subr.mxu0 0.0
    %1268 = vmatpush1.msra.mxu0 0.0
    %1269 = vmatprep.subr.mxu0 0.0
    %1270 = vmatpush1.msra.mxu0 0.0
    %1271 = vmatprep.subr.mxu0 0.0
    %1272 = vmatpush1.msra.mxu0 0.0
    %1273 = vmatprep.subr.mxu0 0.0
    %1274 = vmatpush1.msra.mxu0 0.0
    %1275 = vmatprep.subr.mxu0 0.0
    %1276 = vmatpush1.msra.mxu0 0.0
    %1277 = vmatprep.subr.mxu0 0.0
    %1278 = vmatpush1.msra.mxu0 0.0
    %1279 = vmatprep.mubr.f32.mxu0 0.0
    %1280 = vmatmul.mubr.f32.gmra.mrb[0].mxu0 %v1213
    %v1281 = vpop.f32.mrb[0].mxu0
    %v1282 = vadd.f32 0.0, %v1281
    %v1283 = vpop.f32.mrb[0].mxu0
    %1284 = vdwg.mxu0
    %v1285 = vsel %vm247, %v957, 0
    %1287 = vmatprep.subr.mxu0 0.0
    %1288 = vmatpush1.msra.mxu0 %v959
    %1289 = vmatprep.subr.mxu0 0.0
    %1290 = vmatpush1.msra.mxu0 %v960
    %1291 = vmatprep.subr.mxu0 0.0
    %1292 = vmatpush1.msra.mxu0 %v961
    %1293 = vmatprep.subr.mxu0 0.0
    %1294 = vmatpush1.msra.mxu0 %v962
    %1295 = vmatprep.subr.mxu0 0.0
    %1296 = vmatpush1.msra.mxu0 0.0
    %1297 = vmatprep.subr.mxu0 0.0
    %1298 = vmatpush1.msra.mxu0 0.0
    %1299 = vmatprep.subr.mxu0 0.0
    %1300 = vmatpush1.msra.mxu0 0.0
    %1301 = vmatprep.subr.mxu0 0.0
    %1302 = vmatpush1.msra.mxu0 0.0
    %1303 = vmatprep.subr.mxu0 0.0
    %1304 = vmatpush1.msra.mxu0 0.0
    %1305 = vmatprep.subr.mxu0 0.0
    %1306 = vmatpush1.msra.mxu0 0.0
    %1307 = vmatprep.subr.mxu0 0.0
    %1308 = vmatpush1.msra.mxu0 0.0
    %1309 = vmatprep.subr.mxu0 0.0
    %1310 = vmatpush1.msra.mxu0 0.0
    %1311 = vmatprep.subr.mxu0 0.0
    %1312 = vmatpush1.msra.mxu0 0.0
    %1313 = vmatprep.subr.mxu0 0.0
    %1314 = vmatpush1.msra.mxu0 0.0
    %1315 = vmatprep.subr.mxu0 0.0
    %1316 = vmatpush1.msra.mxu0 0.0
    %1317 = vmatprep.subr.mxu0 0.0
    %1318 = vmatpush1.msra.mxu0 0.0
    %1319 = vmatprep.subr.mxu0 0.0
    %1320 = vmatpush1.msra.mxu0 0.0
    %1321 = vmatprep.subr.mxu0 0.0
    %1322 = vmatpush1.msra.mxu0 0.0
    %1323 = vmatprep.subr.mxu0 0.0
    %1324 = vmatpush1.msra.mxu0 0.0
    %1325 = vmatprep.subr.mxu0 0.0
    %1326 = vmatpush1.msra.mxu0 0.0
    %1327 = vmatprep.subr.mxu0 0.0
    %1328 = vmatpush1.msra.mxu0 0.0
    %1329 = vmatprep.subr.mxu0 0.0
    %1330 = vmatpush1.msra.mxu0 0.0
    %1331 = vmatprep.subr.mxu0 0.0
    %1332 = vmatpush1.msra.mxu0 0.0
    %1333 = vmatprep.subr.mxu0 0.0
    %1334 = vmatpush1.msra.mxu0 0.0
    %1335 = vmatprep.subr.mxu0 0.0
    %1336 = vmatpush1.msra.mxu0 0.0
    %1337 = vmatprep.subr.mxu0 0.0
    %1338 = vmatpush1.msra.mxu0 0.0
    %1339 = vmatprep.subr.mxu0 0.0
    %1340 = vmatpush1.msra.mxu0 0.0
    %1341 = vmatprep.subr.mxu0 0.0
    %1342 = vmatpush1.msra.mxu0 0.0
    %1343 = vmatprep.subr.mxu0 0.0
    %1344 = vmatpush1.msra.mxu0 0.0
    %1345 = vmatprep.subr.mxu0 0.0
    %1346 = vmatpush1.msra.mxu0 0.0
    %1347 = vmatprep.subr.mxu0 0.0
    %1348 = vmatpush1.msra.mxu0 0.0
    %1349 = vmatprep.subr.mxu0 0.0
    %1350 = vmatpush1.msra.mxu0 0.0
    %1351 = vmatprep.mubr.f32.mxu0 0.0
    %1352 = vmatmul.mubr.f32.gmra.mrb[0].mxu0 %v1285
    %v1353 = vpop.f32.mrb[0].mxu0
    %v1354 = vadd.f32 %v1038, %v1353
    %v1355 = vpop.f32.mrb[0].mxu0
    %1356 = vdwg.mxu0
    %v1357 = vrot.slane %v957, 4
    %v1358 = vsel %vm247, %v1357, 0
    %1360 = vmatprep.subr.mxu0 0.0
    %1361 = vmatpush1.msra.mxu0 %v1041
    %1362 = vmatprep.subr.mxu0 0.0
    %1363 = vmatpush1.msra.mxu0 %v1042
    %1364 = vmatprep.subr.mxu0 0.0
    %1365 = vmatpush1.msra.mxu0 %v1043
    %1366 = vmatprep.subr.mxu0 0.0
    %1367 = vmatpush1.msra.mxu0 %v1044
    %1368 = vmatprep.subr.mxu0 0.0
    %1369 = vmatpush1.msra.mxu0 0.0
    %1370 = vmatprep.subr.mxu0 0.0
    %1371 = vmatpush1.msra.mxu0 0.0
    %1372 = vmatprep.subr.mxu0 0.0
    %1373 = vmatpush1.msra.mxu0 0.0
    %1374 = vmatprep.subr.mxu0 0.0
    %1375 = vmatpush1.msra.mxu0 0.0
    %1376 = vmatprep.subr.mxu0 0.0
    %1377 = vmatpush1.msra.mxu0 0.0
    %1378 = vmatprep.subr.mxu0 0.0
    %1379 = vmatpush1.msra.mxu0 0.0
    %1380 = vmatprep.subr.mxu0 0.0
    %1381 = vmatpush1.msra.mxu0 0.0
    %1382 = vmatprep.subr.mxu0 0.0
    %1383 = vmatpush1.msra.mxu0 0.0
    %1384 = vmatprep.subr.mxu0 0.0
    %1385 = vmatpush1.msra.mxu0 0.0
    %1386 = vmatprep.subr.mxu0 0.0
    %1387 = vmatpush1.msra.mxu0 0.0
    %1388 = vmatprep.subr.mxu0 0.0
    %1389 = vmatpush1.msra.mxu0 0.0
    %1390 = vmatprep.subr.mxu0 0.0
    %1391 = vmatpush1.msra.mxu0 0.0
    %1392 = vmatprep.subr.mxu0 0.0
    %1393 = vmatpush1.msra.mxu0 0.0
    %1394 = vmatprep.subr.mxu0 0.0
    %1395 = vmatpush1.msra.mxu0 0.0
    %1396 = vmatprep.subr.mxu0 0.0
    %1397 = vmatpush1.msra.mxu0 0.0
    %1398 = vmatprep.subr.mxu0 0.0
    %1399 = vmatpush1.msra.mxu0 0.0
    %1400 = vmatprep.subr.mxu0 0.0
    %1401 = vmatpush1.msra.mxu0 0.0
    %1402 = vmatprep.subr.mxu0 0.0
    %1403 = vmatpush1.msra.mxu0 0.0
    %1404 = vmatprep.subr.mxu0 0.0
    %1405 = vmatpush1.msra.mxu0 0.0
    %1406 = vmatprep.subr.mxu0 0.0
    %1407 = vmatpush1.msra.mxu0 0.0
    %1408 = vmatprep.subr.mxu0 0.0
    %1409 = vmatpush1.msra.mxu0 0.0
    %1410 = vmatprep.subr.mxu0 0.0
    %1411 = vmatpush1.msra.mxu0 0.0
    %1412 = vmatprep.subr.mxu0 0.0
    %1413 = vmatpush1.msra.mxu0 0.0
    %1414 = vmatprep.subr.mxu0 0.0
    %1415 = vmatpush1.msra.mxu0 0.0
    %1416 = vmatprep.subr.mxu0 0.0
    %1417 = vmatpush1.msra.mxu0 0.0
    %1418 = vmatprep.subr.mxu0 0.0
    %1419 = vmatpush1.msra.mxu0 0.0
    %1420 = vmatprep.subr.mxu0 0.0
    %1421 = vmatpush1.msra.mxu0 0.0
    %1422 = vmatprep.subr.mxu0 0.0
    %1423 = vmatpush1.msra.mxu0 0.0
    %1424 = vmatprep.mubr.f32.mxu0 0.0
    %1425 = vmatmul.mubr.f32.gmra.mrb[0].mxu0 %v1358
    %v1426 = vpop.f32.mrb[0].mxu0
    %v1427 = vadd.f32 %v1119, %v1426
    %v1428 = vpop.f32.mrb[0].mxu0
    %1429 = vdwg.mxu0
    %v1430 = vsel %vm247, %v958, 0
    %1432 = vmatprep.subr.mxu0 0.0
    %1433 = vmatpush1.msra.mxu0 %v1122
    %1434 = vmatprep.subr.mxu0 0.0
    %1435 = vmatpush1.msra.mxu0 %v1123
    %1436 = vmatprep.subr.mxu0 0.0
    %1437 = vmatpush1.msra.mxu0 %v1124
    %1438 = vmatprep.subr.mxu0 0.0
    %1439 = vmatpush1.msra.mxu0 %v1125
    %1440 = vmatprep.subr.mxu0 0.0
    %1441 = vmatpush1.msra.mxu0 0.0
    %1442 = vmatprep.subr.mxu0 0.0
    %1443 = vmatpush1.msra.mxu0 0.0
    %1444 = vmatprep.subr.mxu0 0.0
    %1445 = vmatpush1.msra.mxu0 0.0
    %1446 = vmatprep.subr.mxu0 0.0
    %1447 = vmatpush1.msra.mxu0 0.0
    %1448 = vmatprep.subr.mxu0 0.0
    %1449 = vmatpush1.msra.mxu0 0.0
    %1450 = vmatprep.subr.mxu0 0.0
    %1451 = vmatpush1.msra.mxu0 0.0
    %1452 = vmatprep.subr.mxu0 0.0
    %1453 = vmatpush1.msra.mxu0 0.0
    %1454 = vmatprep.subr.mxu0 0.0
    %1455 = vmatpush1.msra.mxu0 0.0
    %1456 = vmatprep.subr.mxu0 0.0
    %1457 = vmatpush1.msra.mxu0 0.0
    %1458 = vmatprep.subr.mxu0 0.0
    %1459 = vmatpush1.msra.mxu0 0.0
    %1460 = vmatprep.subr.mxu0 0.0
    %1461 = vmatpush1.msra.mxu0 0.0
    %1462 = vmatprep.subr.mxu0 0.0
    %1463 = vmatpush1.msra.mxu0 0.0
    %1464 = vmatprep.subr.mxu0 0.0
    %1465 = vmatpush1.msra.mxu0 0.0
    %1466 = vmatprep.subr.mxu0 0.0
    %1467 = vmatpush1.msra.mxu0 0.0
    %1468 = vmatprep.subr.mxu0 0.0
    %1469 = vmatpush1.msra.mxu0 0.0
    %1470 = vmatprep.subr.mxu0 0.0
    %1471 = vmatpush1.msra.mxu0 0.0
    %1472 = vmatprep.subr.mxu0 0.0
    %1473 = vmatpush1.msra.mxu0 0.0
    %1474 = vmatprep.subr.mxu0 0.0
    %1475 = vmatpush1.msra.mxu0 0.0
    %1476 = vmatprep.subr.mxu0 0.0
    %1477 = vmatpush1.msra.mxu0 0.0
    %1478 = vmatprep.subr.mxu0 0.0
    %1479 = vmatpush1.msra.mxu0 0.0
    %1480 = vmatprep.subr.mxu0 0.0
    %1481 = vmatpush1.msra.mxu0 0.0
    %1482 = vmatprep.subr.mxu0 0.0
    %1483 = vmatpush1.msra.mxu0 0.0
    %1484 = vmatprep.subr.mxu0 0.0
    %1485 = vmatpush1.msra.mxu0 0.0
    %1486 = vmatprep.subr.mxu0 0.0
    %1487 = vmatpush1.msra.mxu0 0.0
    %1488 = vmatprep.subr.mxu0 0.0
    %1489 = vmatpush1.msra.mxu0 0.0
    %1490 = vmatprep.subr.mxu0 0.0
    %1491 = vmatpush1.msra.mxu0 0.0
    %1492 = vmatprep.subr.mxu0 0.0
    %1493 = vmatpush1.msra.mxu0 0.0
    %1494 = vmatprep.subr.mxu0 0.0
    %1495 = vmatpush1.msra.mxu0 0.0
    %1496 = vmatprep.mubr.f32.mxu0 0.0
    %1497 = vmatmul.mubr.f32.gmra.mrb[0].mxu0 %v1430
    %v1498 = vpop.f32.mrb[0].mxu0
    %v1499 = vadd.f32 %v1201, %v1498
    %v1500 = vpop.f32.mrb[0].mxu0
    %1501 = vdwg.mxu0
    %v1502 = vrot.slane %v958, 4
    %v1503 = vsel %vm247, %v1502, 0
    %1505 = vmatprep.subr.mxu0 0.0
    %1506 = vmatpush1.msra.mxu0 %v1204
    %1507 = vmatprep.subr.mxu0 0.0
    %1508 = vmatpush1.msra.mxu0 %v1205
    %1509 = vmatprep.subr.mxu0 0.0
    %1510 = vmatpush1.msra.mxu0 %v1206
    %1511 = vmatprep.subr.mxu0 0.0
    %1512 = vmatpush1.msra.mxu0 %v1207
    %1513 = vmatprep.subr.mxu0 0.0
    %1514 = vmatpush1.msra.mxu0 0.0
    %1515 = vmatprep.subr.mxu0 0.0
    %1516 = vmatpush1.msra.mxu0 0.0
    %1517 = vmatprep.subr.mxu0 0.0
    %1518 = vmatpush1.msra.mxu0 0.0
    %1519 = vmatprep.subr.mxu0 0.0
    %1520 = vmatpush1.msra.mxu0 0.0
    %1521 = vmatprep.subr.mxu0 0.0
    %1522 = vmatpush1.msra.mxu0 0.0
    %1523 = vmatprep.subr.mxu0 0.0
    %1524 = vmatpush1.msra.mxu0 0.0
    %1525 = vmatprep.subr.mxu0 0.0
    %1526 = vmatpush1.msra.mxu0 0.0
    %1527 = vmatprep.subr.mxu0 0.0
    %1528 = vmatpush1.msra.mxu0 0.0
    %1529 = vmatprep.subr.mxu0 0.0
    %1530 = vmatpush1.msra.mxu0 0.0
    %1531 = vmatprep.subr.mxu0 0.0
    %1532 = vmatpush1.msra.mxu0 0.0
    %1533 = vmatprep.subr.mxu0 0.0
    %1534 = vmatpush1.msra.mxu0 0.0
    %1535 = vmatprep.subr.mxu0 0.0
    %1536 = vmatpush1.msra.mxu0 0.0
    %1537 = vmatprep.subr.mxu0 0.0
    %1538 = vmatpush1.msra.mxu0 0.0
    %1539 = vmatprep.subr.mxu0 0.0
    %1540 = vmatpush1.msra.mxu0 0.0
    %1541 = vmatprep.subr.mxu0 0.0
    %1542 = vmatpush1.msra.mxu0 0.0
    %1543 = vmatprep.subr.mxu0 0.0
    %1544 = vmatpush1.msra.mxu0 0.0
    %1545 = vmatprep.subr.mxu0 0.0
    %1546 = vmatpush1.msra.mxu0 0.0
    %1547 = vmatprep.subr.mxu0 0.0
    %1548 = vmatpush1.msra.mxu0 0.0
    %1549 = vmatprep.subr.mxu0 0.0
    %1550 = vmatpush1.msra.mxu0 0.0
    %1551 = vmatprep.subr.mxu0 0.0
    %1552 = vmatpush1.msra.mxu0 0.0
    %1553 = vmatprep.subr.mxu0 0.0
    %1554 = vmatpush1.msra.mxu0 0.0
    %1555 = vmatprep.subr.mxu0 0.0
    %1556 = vmatpush1.msra.mxu0 0.0
    %1557 = vmatprep.subr.mxu0 0.0
    %1558 = vmatpush1.msra.mxu0 0.0
    %1559 = vmatprep.subr.mxu0 0.0
    %1560 = vmatpush1.msra.mxu0 0.0
    %1561 = vmatprep.subr.mxu0 0.0
    %1562 = vmatpush1.msra.mxu0 0.0
    %1563 = vmatprep.subr.mxu0 0.0
    %1564 = vmatpush1.msra.mxu0 0.0
    %1565 = vmatprep.subr.mxu0 0.0
    %1566 = vmatpush1.msra.mxu0 0.0
    %1567 = vmatprep.subr.mxu0 0.0
    %1568 = vmatpush1.msra.mxu0 0.0
    %1569 = vmatprep.mubr.f32.mxu0 0.0
    %1570 = vmatmul.mubr.f32.gmra.mrb[0].mxu0 %v1503
    %v1571 = vpop.f32.mrb[0].mxu0
    %v1572 = vadd.f32 %v1282, %v1571
    %v1573 = vpop.f32.mrb[0].mxu0
    %1574 = vdwg.mxu0
    %v1575 = vadd.f32 %v1354, %v1427
    %v1576 = vadd.f32 %v1499, %v1572
    %v1577 = vadd.f32 %v1575, %v1576
    %v1578 = vld [vmem:[%s13] sm:$0x1]
    %v1580 = vlaneseq
    %v1581 = vshrl.u32 %v1580, 7
    %v1582 = vsub.s32 0, %v1581
    %v1583 = vrot.slane %v1578, %v1582
    %v1585 = vadd.f32 %v1577, %v1583
    %v1586 = vmax.f32 %v1585, 0.0
    %v1587 = vld [vmem:[%s14] sm:$0xff]
    %v1588 = vld [vmem:[%s14 + $0x8] sm:$0xff]
    %v1589 = vld [vmem:[%s14 + $0x10] sm:$0xff]
    %v1590 = vld [vmem:[%s14 + $0x18] sm:$0xff]
    %v1591 = vld [vmem:[%s14 + $0x20] sm:$0xff]
    %v1592 = vld [vmem:[%s14 + $0x28] sm:$0xff]
    %v1593 = vld [vmem:[%s14 + $0x30] sm:$0xff]
    %v1594 = vld [vmem:[%s14 + $0x38] sm:$0xff]
    %v1595 = vld [vmem:[%s15] sm:$0x1]
    %v1597 = vlaneseq
    %v1598 = vshrl.u32 %v1597, 7
    %v1599 = vsub.s32 0, %v1598
    %v1600 = vrot.slane %v1595, %v1599
    %vm1602 = vcmask 523264
    %v1604 = vsel %vm1602, %v1586, 0
    %1606 = vmatprep.subr.mxu0 0.0
    %1607 = vmatpush1.msra.mxu0 %v1587
    %1608 = vmatprep.subr.mxu0 0.0
    %1609 = vmatpush1.msra.mxu0 %v1588
    %1610 = vmatprep.subr.mxu0 0.0
    %1611 = vmatpush1.msra.mxu0 %v1589
    %1612 = vmatprep.subr.mxu0 0.0
    %1613 = vmatpush1.msra.mxu0 %v1590
    %1614 = vmatprep.subr.mxu0 0.0
    %1615 = vmatpush1.msra.mxu0 %v1591
    %1616 = vmatprep.subr.mxu0 0.0
    %1617 = vmatpush1.msra.mxu0 %v1592
    %1618 = vmatprep.subr.mxu0 0.0
    %1619 = vmatpush1.msra.mxu0 %v1593
    %1620 = vmatprep.subr.mxu0 0.0
    %1621 = vmatpush1.msra.mxu0 %v1594
    %1622 = vmatprep.subr.mxu0 0.0
    %1623 = vmatpush1.msra.mxu0 0.0
    %1624 = vmatprep.subr.mxu0 0.0
    %1625 = vmatpush1.msra.mxu0 0.0
    %1626 = vmatprep.subr.mxu0 0.0
    %1627 = vmatpush1.msra.mxu0 0.0
    %1628 = vmatprep.subr.mxu0 0.0
    %1629 = vmatpush1.msra.mxu0 0.0
    %1630 = vmatprep.subr.mxu0 0.0
    %1631 = vmatpush1.msra.mxu0 0.0
    %1632 = vmatprep.subr.mxu0 0.0
    %1633 = vmatpush1.msra.mxu0 0.0
    %1634 = vmatprep.subr.mxu0 0.0
    %1635 = vmatpush1.msra.mxu0 0.0
    %1636 = vmatprep.subr.mxu0 0.0
    %1637 = vmatpush1.msra.mxu0 0.0
    %1638 = vmatprep.subr.mxu0 0.0
    %1639 = vmatpush1.msra.mxu0 0.0
    %1640 = vmatprep.subr.mxu0 0.0
    %1641 = vmatpush1.msra.mxu0 0.0
    %1642 = vmatprep.subr.mxu0 0.0
    %1643 = vmatpush1.msra.mxu0 0.0
    %1644 = vmatprep.subr.mxu0 0.0
    %1645 = vmatpush1.msra.mxu0 0.0
    %1646 = vmatprep.subr.mxu0 0.0
    %1647 = vmatpush1.msra.mxu0 0.0
    %1648 = vmatprep.subr.mxu0 0.0
    %1649 = vmatpush1.msra.mxu0 0.0
    %1650 = vmatprep.subr.mxu0 0.0
    %1651 = vmatpush1.msra.mxu0 0.0
    %1652 = vmatprep.subr.mxu0 0.0
    %1653 = vmatpush1.msra.mxu0 0.0
    %1654 = vmatprep.subr.mxu0 0.0
    %1655 = vmatpush1.msra.mxu0 0.0
    %1656 = vmatprep.subr.mxu0 0.0
    %1657 = vmatpush1.msra.mxu0 0.0
    %1658 = vmatprep.subr.mxu0 0.0
    %1659 = vmatpush1.msra.mxu0 0.0
    %1660 = vmatprep.subr.mxu0 0.0
    %1661 = vmatpush1.msra.mxu0 0.0
    %1662 = vmatprep.subr.mxu0 0.0
    %1663 = vmatpush1.msra.mxu0 0.0
    %1664 = vmatprep.subr.mxu0 0.0
    %1665 = vmatpush1.msra.mxu0 0.0
    %1666 = vmatprep.subr.mxu0 0.0
    %1667 = vmatpush1.msra.mxu0 0.0
    %1668 = vmatprep.subr.mxu0 0.0
    %1669 = vmatpush1.msra.mxu0 0.0
    %1670 = vmatprep.mubr.f32.mxu0 0.0
    %1671 = vmatmul.mubr.f32.gmra.mrb[0].mxu0 %v1604
    %v1672 = vpop.f32.mrb[0].mxu0
    %v1673 = vadd.f32 %v1600, %v1672
    %v1674 = vpop.f32.mrb[0].mxu0
    %1675 = vdwg.mxu0
    %vm1676 = vcmask 156672
    %1677 = vst.msk [vmem:[#allocation2] sm:$0x3] %vm1676, %v1673
    // Predicated region
    $region66: #{model_forward.1} parent=1 // pred_check
      _
    $region67: #{model_forward.1} parent=1 // pred_check_branch
      %1679 = sbr.rel (0) target = $region69
    $region68: #{model_forward.1} parent=1 // pred_region
      %s1681 = ssub.s32 32, 32
      %1682 = vsyncadd [#allocation3], %s1681
      %s1684 = sshll.u32 [#allocation2], 4
      %s1685 = int_to_ptr.vmem [resolvable:$true] %s1684
      %1687 = dma.vmem_to_hbm [thread:$0]  %s1685, 32, %s16, [#allocation3]
    $region69: #{model_forward.1} parent=1 // pred_fallthru
      _
    // Predicated region
    $region70: #{model_forward.1} parent=1 // pred_check
      _
    $region71: #{model_forward.1} parent=1 // pred_check_branch
      %1689 = sbr.rel (0) target = $region73
    $region72: #{model_forward.1} parent=1 // pred_region
      %1690 = dma.done [#allocation3], 32
    $region73: #{model_forward.1} parent=1 // pred_fallthru
      _
    %1691 = vsyncpa [#allocation3], 1

</llo_original>
